<compile_context>
chip_gen: v7x
topology: tpu7x:2x2x1
jax: 0.10.0
libtpu: 0.0.40
codegen_flags: <defaults>
</compile_context>

<pallas_src>
import jax
import jax.numpy as jnp
from jax import lax
from jax.experimental import pallas as pl
from jax.experimental.pallas import tpu as pltpu

HIDDEN_DIM = 32          # skill_embd_dim
NUM_LAYERS = 3
LEAKY_SLOPE = 0.2        # PyG GATConv default negative_slope
MASK_NEG = -1e30


def _gat_forward_kernel(emb_ref, src_ref, dst_ref, w_aug_ref, lparams_ref,
                        wout_b_ref, out_ref):
    """Fused forward: adjacency build -> 3 x (GATConv -> PReLU) -> Linear.

    Shapes inside the kernel (all resident in VMEM):
      emb      [N, D]        f32  node embeddings
      src      [E, 1]        i32  edge sources   (column orientation)
      dst      [1, E]        i32  edge destinations (row orientation)
      w_aug    [L, D, D+1]   f32  [:, :, :D] = W_l ([in,out]); [:, :, D] = W_l @ a_dst_l
      lparams  [L, 3, D]     f32  row 0 = W_l @ a_src_l, row 1 = bias_l, row 2 = prelu_l
      wout_b   [D+1, D]      f32  [:D] = final Linear weight ([in,out]); [D] = bias
      out      [N, D]        f32
    """
    n, d = emb_ref.shape
    e = src_ref.shape[0]

    # ---- Dense adjacency (with edge multiplicities) built in VMEM, no XLA scatter ----
    src_col = src_ref[...]                                   # (E, 1)
    dst_row = dst_ref[...]                                   # (1, E)
    # MXU-native orientation: (N, E) @ (E, N), contraction over the edge axis.
    dst_oh = jnp.where(lax.broadcasted_iota(jnp.int32, (n, e), 0) == dst_row,
                       1.0, 0.0).astype(jnp.bfloat16)        # dst_oh[i, k] = [dst_k == i]
    src_oh = jnp.where(lax.broadcasted_iota(jnp.int32, (e, n), 1) == src_col,
                       1.0, 0.0).astype(jnp.bfloat16)        # src_oh[k, j] = [src_k == j]
    # counts[i, j] = number of edges j -> i (bf16 inputs are exact for 0/1 values)
    counts = jnp.dot(dst_oh, src_oh, preferred_element_type=jnp.float32)   # (N, N)

    row_ids = lax.broadcasted_iota(jnp.int32, (n, n), 0)
    col_ids = lax.broadcasted_iota(jnp.int32, (n, n), 1)
    is_diag = row_ids == col_ids
    # PyG GATConv removes existing self-loops and adds exactly one per node; parallel
    # (duplicate) edges each contribute their own softmax term -> keep multiplicity.
    mult = jnp.where(is_diag, 1.0, counts)                   # (N, N) edge multiplicity
    neg_mask = jnp.where(mult > 0.0, 0.0, MASK_NEG)          # additive mask (hoisted)

    h = emb_ref[...]                                         # (N, D)

    for l in range(NUM_LAYERS):      # static unroll (3 iterations) for LLO visibility
        w_aug = w_aug_ref[l]         # (D, D+1)
        lp = lparams_ref[l]          # (3, D)
        asrcp = lp[0:1, :]           # (1, D)  == W_l @ a_src_l
        bias = lp[1:2, :]            # (1, D)
        a_pr = lp[2:3, :]            # (1, D)  PReLU slope (scalar, broadcast)

        # One fused MXU push: columns :D are h' = h @ W, column D is e_dst per node.
        hp_aug = jnp.dot(h, w_aug, preferred_element_type=jnp.float32)    # (N, D+1)
        hp = hp_aug[:, :d]                                                # (N, D)
        e_dst_col = hp_aug[:, d:d + 1]                                    # (N, 1)
        # Tiny independent matmul for the src logits; reads h (not hp_aug) so it can
        # overlap with the W_aug push instead of waiting on its result pop.
        e_src_row = lax.dot_general(asrcp, h, (((1,), (1,)), ((), ())),
                                    preferred_element_type=jnp.float32)   # (1, N)

        # scores[dst, src] = LeakyReLU(e_dst[dst] + e_src[src]) + additive mask
        s = e_dst_col + e_src_row                                         # (N, N)
        scores = jnp.maximum(s, LEAKY_SLOPE * s) + neg_mask
        scores = scores - jnp.max(scores, axis=-1, keepdims=True)  # kept for safety
        p = jnp.exp(scores) * mult            # masked -> 0; dup edges weighted exactly
        denom = jnp.sum(p, axis=-1, keepdims=True)            # >= 1 (self-loops)
        attn = p * pl.reciprocal(denom, approx=True)                      # (N, N)

        # Aggregate messages (MXU) + bias, then PReLU.
        h = jnp.dot(attn, hp, preferred_element_type=jnp.float32) + bias  # (N, D)
        h = jnp.where(h > 0, h, a_pr * h)                                 # PReLU
        # Dropout(p=0.3) is the identity in eval mode.
        # TODO(synk): training-mode dropout (stateful PRNG mask) not implemented.

    wb = wout_b_ref[...]                                     # (D+1, D)
    out_ref[...] = (jnp.dot(h, wb[:d, :], preferred_element_type=jnp.float32)
                    + wb[d:d + 1, :])


def gat_forward(x_ids, edge_index, edge_weight, params):
    """Runs the GAT forward pass. edge_weight is accepted but unused (GATConv is
    called without edge weights in the reference module)."""
    del edge_weight

    # --- plain-JAX glue: embedding gather + tiny param packing (adjacency is in-kernel) ---
    emb = jnp.take(params["emb_table"], x_ids, axis=0).astype(jnp.float32)  # (N, D)
    n, d = emb.shape
    edges = edge_index.astype(jnp.int32)                                     # (2, E)
    e = edges.shape[1]
    src_col = edges[0].reshape(e, 1)                                         # (E, 1)
    dst_row = edges[1].reshape(1, e)                                         # (1, E)

    ws = params["gat_w"]          # (L, D, D)  [in, out]
    asrc = params["gat_att_src"]  # (L, 1, D)
    adst = params["gat_att_dst"]  # (L, 1, D)
    bs = params["gat_bias"]       # (L, 1, D)
    prelu = params["prelu"]       # (L, 1, 1)

    # Augmented per-layer weight: [W_l | W_l @ a_dst_l]  -> one MXU push per layer.
    adst_p = jnp.einsum("lio,lo->li", ws, adst[:, 0, :])                     # (L, D)
    w_aug = jnp.concatenate([ws, adst_p[:, :, None]], axis=2)                # (L, D, D+1)
    # Pack the remaining per-layer vectors into one lane-dense buffer.
    asrc_p = jnp.einsum("lio,lo->li", ws, asrc[:, 0, :])                     # (L, D)
    prelu_b = jnp.broadcast_to(prelu[:, 0, :], (NUM_LAYERS, d))              # (L, D)
    lparams = jnp.stack([asrc_p, bs[:, 0, :], prelu_b], axis=1)              # (L, 3, D)
    # Final Linear weight + bias packed together.
    wout_b = jnp.concatenate([params["out_w"], params["out_b"]], axis=0)     # (D+1, D)

    full = lambda shape: pl.BlockSpec(shape, lambda i: (0,) * len(shape))

    return pl.pallas_call(
        _gat_forward_kernel,
        out_shape=jax.ShapeDtypeStruct((n, d), jnp.float32),
        grid=(1,),
        in_specs=[
            full((n, d)),                          # emb
            full((e, 1)),                          # edge sources (column)
            full((1, e)),                          # edge destinations (row)
            full((NUM_LAYERS, d, d + 1)),          # augmented GAT weights
            full((NUM_LAYERS, 3, d)),              # [W@a_src; bias; prelu]
            full((d + 1, d)),                      # [out weight; out bias]
        ],
        out_specs=full((n, d)),
        compiler_params=pltpu.CompilerParams(
            dimension_semantics=("arbitrary",)),
    )(emb, src_col, dst_row, w_aug, lparams, wout_b)


def init_params(key, num_skills, hidden_dim):
    ks = jax.random.split(key, 8)
    scale = 1.0 / jnp.sqrt(jnp.float32(hidden_dim))
    return {
        "emb_table": jax.random.normal(ks[0], (num_skills, hidden_dim), jnp.float32),
        # GATConv lin weights stored pre-transposed [in, out]
        "gat_w": scale * jax.random.normal(
            ks[1], (NUM_LAYERS, hidden_dim, hidden_dim), jnp.float32),
        "gat_att_src": scale * jax.random.normal(
            ks[2], (NUM_LAYERS, 1, hidden_dim), jnp.float32),
        "gat_att_dst": scale * jax.random.normal(
            ks[3], (NUM_LAYERS, 1, hidden_dim), jnp.float32),
        "gat_bias": jnp.zeros((NUM_LAYERS, 1, hidden_dim), jnp.float32),
        # PyTorch nn.PReLU() default init = 0.25
        "prelu": jnp.full((NUM_LAYERS, 1, 1), 0.25, jnp.float32),
        # Final nn.Linear, stored pre-transposed [in, out]
        "out_w": scale * jax.random.normal(
            ks[4], (hidden_dim, hidden_dim), jnp.float32),
        "out_b": 0.01 * jax.random.normal(ks[5], (1, hidden_dim), jnp.float32),
    }


if __name__ == "__main__":
    key = jax.random.PRNGKey(0)
    num_skills = 64
    hidden_dim = HIDDEN_DIM
    num_edges = 256

    k_param, k_src, k_dst, k_w = jax.random.split(key, 4)
    params = init_params(k_param, num_skills, hidden_dim)

    # Node feature input = all skill IDs; graph over those N = num_skills nodes.
    x = jnp.arange(num_skills, dtype=jnp.int32)
    edge_src = jax.random.randint(k_src, (num_edges,), 0, num_skills, dtype=jnp.int32)
    edge_dst = jax.random.randint(k_dst, (num_edges,), 0, num_skills, dtype=jnp.int32)
    edge_index = jnp.stack([edge_src, edge_dst])                       # (2, E)
    edge_weight = jax.random.uniform(k_w, (num_edges,), jnp.float32)   # unused by GATConv

    out = gat_forward(x, edge_index, edge_weight, params)
    jax.block_until_ready(out)
    assert out.shape == (num_skills, hidden_dim)
    assert jnp.all(jnp.isfinite(out))
    print("KERNEL_OK")
</pallas_src>

<mosaic_0001>
module attributes {stable_mosaic.version = 11 : i64} {
  func.func @_gat_forward_kernel(%arg0: i32, %arg1: memref<64x32xf32, #tpu.memory_space<vmem>>, %arg2: memref<256x1xi32, #tpu.memory_space<vmem>>, %arg3: memref<1x256xi32, #tpu.memory_space<vmem>>, %arg4: memref<3x32x33xf32, #tpu.memory_space<vmem>>, %arg5: memref<3x3x32xf32, #tpu.memory_space<vmem>>, %arg6: memref<33x32xf32, #tpu.memory_space<vmem>>, %arg7: memref<64x32xf32, #tpu.memory_space<vmem>>) attributes {dimension_semantics = [#tpu.dimension_semantics<arbitrary>], iteration_bounds = array<i64: 1>, scalar_prefetch = 0 : i64, scratch_operands = 0 : i64, tpu.core_type = #tpu.core_type<tc>, window_params = [{pipeline_mode = #tpu.pipeline_mode<synchronous>, transform_indices = @transform_0, window_bounds = array<i64: 64, 32>}, {pipeline_mode = #tpu.pipeline_mode<synchronous>, transform_indices = @transform_1, window_bounds = array<i64: 256, 1>}, {pipeline_mode = #tpu.pipeline_mode<synchronous>, transform_indices = @transform_2, window_bounds = array<i64: 1, 256>}, {pipeline_mode = #tpu.pipeline_mode<synchronous>, transform_indices = @transform_3, window_bounds = array<i64: 3, 32, 33>}, {pipeline_mode = #tpu.pipeline_mode<synchronous>, transform_indices = @transform_4, window_bounds = array<i64: 3, 3, 32>}, {pipeline_mode = #tpu.pipeline_mode<synchronous>, transform_indices = @transform_5, window_bounds = array<i64: 33, 32>}, {pipeline_mode = #tpu.pipeline_mode<synchronous>, transform_indices = @transform_6, window_bounds = array<i64: 64, 32>}]} {
    %c0 = arith.constant 0 : index
    %c0_0 = arith.constant 0 : index
    %0 = vector.load %arg2[%c0, %c0_0] : memref<256x1xi32, #tpu.memory_space<vmem>>, vector<256x1xi32>
    %c0_1 = arith.constant 0 : index
    %c0_2 = arith.constant 0 : index
    %1 = vector.load %arg3[%c0_1, %c0_2] : memref<1x256xi32, #tpu.memory_space<vmem>>, vector<1x256xi32>
    %2 = tpu.iota {dimensions = array<i32: 0>} : vector<64x256xi32>
    %3 = vector.broadcast %1 : vector<1x256xi32> to vector<64x256xi32>
    %4 = arith.cmpi eq, %2, %3 : vector<64x256xi32>
    %cst = arith.constant 1.000000e+00 : f32
    %cst_3 = arith.constant 0.000000e+00 : f32
    %5 = vector.broadcast %cst : f32 to vector<64x256xf32>
    %6 = vector.broadcast %cst_3 : f32 to vector<64x256xf32>
    %7 = arith.select %4, %5, %6 : vector<64x256xi1>, vector<64x256xf32>
    %8 = arith.truncf %7 : vector<64x256xf32> to vector<64x256xbf16>
    %9 = tpu.iota {dimensions = array<i32: 1>} : vector<256x64xi32>
    %10 = vector.broadcast %0 : vector<256x1xi32> to vector<256x64xi32>
    %11 = arith.cmpi eq, %9, %10 : vector<256x64xi32>
    %cst_4 = arith.constant 1.000000e+00 : f32
    %cst_5 = arith.constant 0.000000e+00 : f32
    %12 = vector.broadcast %cst_4 : f32 to vector<256x64xf32>
    %13 = vector.broadcast %cst_5 : f32 to vector<256x64xf32>
    %14 = arith.select %11, %12, %13 : vector<256x64xi1>, vector<256x64xf32>
    %15 = arith.truncf %14 : vector<256x64xf32> to vector<256x64xbf16>
    %cst_6 = arith.constant dense<0.000000e+00> : vector<64x64xf32>
    %16 = tpu.matmul %8, %15, %cst_6 {dimension_numbers = #tpu.dot_dimension_numbers<[1], [0], [0], [1], [0, 0, 1, 1], [], []>} : vector<64x256xbf16>, vector<256x64xbf16>, vector<64x64xf32> -> vector<64x64xf32>
    %17 = tpu.iota {dimensions = array<i32: 0>} : vector<64x64xi32>
    %18 = tpu.iota {dimensions = array<i32: 1>} : vector<64x64xi32>
    %19 = arith.cmpi eq, %17, %18 : vector<64x64xi32>
    %cst_7 = arith.constant 1.000000e+00 : f32
    %20 = vector.broadcast %cst_7 : f32 to vector<64x64xf32>
    %21 = arith.select %19, %20, %16 : vector<64x64xi1>, vector<64x64xf32>
    %cst_8 = arith.constant 0.000000e+00 : f32
    %22 = vector.broadcast %cst_8 : f32 to vector<64x64xf32>
    %23 = arith.cmpf ogt, %21, %22 : vector<64x64xf32>
    %cst_9 = arith.constant 0.000000e+00 : f32
    %cst_10 = arith.constant -1.000000e+30 : f32
    %24 = vector.broadcast %cst_9 : f32 to vector<64x64xf32>
    %25 = vector.broadcast %cst_10 : f32 to vector<64x64xf32>
    %26 = arith.select %23, %24, %25 : vector<64x64xi1>, vector<64x64xf32>
    %c0_11 = arith.constant 0 : index
    %c0_12 = arith.constant 0 : index
    %27 = vector.load %arg1[%c0_11, %c0_12] : memref<64x32xf32, #tpu.memory_space<vmem>>, vector<64x32xf32>
    %c0_13 = arith.constant 0 : index
    %c0_14 = arith.constant 0 : index
    %c0_15 = arith.constant 0 : index
    %28 = vector.load %arg4[%c0_13, %c0_14, %c0_15] : memref<3x32x33xf32, #tpu.memory_space<vmem>>, vector<1x32x33xf32>
    %29 = vector.shape_cast %28 : vector<1x32x33xf32> to vector<32x33xf32>
    %c0_16 = arith.constant 0 : index
    %c0_17 = arith.constant 0 : index
    %c0_18 = arith.constant 0 : index
    %30 = vector.load %arg5[%c0_16, %c0_17, %c0_18] : memref<3x3x32xf32, #tpu.memory_space<vmem>>, vector<1x3x32xf32>
    %31 = vector.shape_cast %30 : vector<1x3x32xf32> to vector<3x32xf32>
    %32 = vector.extract_strided_slice %31 {offsets = [0, 0], sizes = [1, 32], strides = [1, 1]} : vector<3x32xf32> to vector<1x32xf32>
    %33 = vector.extract_strided_slice %31 {offsets = [1, 0], sizes = [1, 32], strides = [1, 1]} : vector<3x32xf32> to vector<1x32xf32>
    %34 = vector.extract_strided_slice %31 {offsets = [2, 0], sizes = [1, 32], strides = [1, 1]} : vector<3x32xf32> to vector<1x32xf32>
    %cst_19 = arith.constant dense<0.000000e+00> : vector<64x33xf32>
    %35 = tpu.matmul %27, %29, %cst_19 {dimension_numbers = #tpu.dot_dimension_numbers<[1], [0], [0], [1], [0, 0, 1, 1], [], []>} : vector<64x32xf32>, vector<32x33xf32>, vector<64x33xf32> -> vector<64x33xf32>
    %36 = vector.extract_strided_slice %35 {offsets = [0, 0], sizes = [64, 32], strides = [1, 1]} : vector<64x33xf32> to vector<64x32xf32>
    %37 = vector.extract_strided_slice %35 {offsets = [0, 32], sizes = [64, 1], strides = [1, 1]} : vector<64x33xf32> to vector<64x1xf32>
    %cst_20 = arith.constant dense<0.000000e+00> : vector<1x64xf32>
    %38 = tpu.matmul %32, %27, %cst_20 {dimension_numbers = #tpu.dot_dimension_numbers<[1], [1], [0], [0], [0, 0, 1, 0], [], []>} : vector<1x32xf32>, vector<64x32xf32>, vector<1x64xf32> -> vector<1x64xf32>
    %39 = vector.broadcast %37 : vector<64x1xf32> to vector<64x64xf32>
    %40 = vector.broadcast %38 : vector<1x64xf32> to vector<64x64xf32>
    %41 = arith.addf %39, %40 : vector<64x64xf32>
    %cst_21 = arith.constant 2.000000e-01 : f32
    %42 = vector.broadcast %cst_21 : f32 to vector<64x64xf32>
    %43 = arith.mulf %42, %41 : vector<64x64xf32>
    %44 = arith.maximumf %41, %43 : vector<64x64xf32>
    %45 = arith.addf %44, %26 : vector<64x64xf32>
    %cst_22 = arith.constant dense<0xFF800000> : vector<64xf32>
    %46 = vector.multi_reduction <maximumf>, %45, %cst_22 [1] : vector<64x64xf32> to vector<64xf32>
    %47 = vector.shape_cast %46 : vector<64xf32> to vector<64x1xf32>
    %48 = vector.broadcast %47 : vector<64x1xf32> to vector<64x64xf32>
    %49 = arith.subf %45, %48 : vector<64x64xf32>
    %50 = math.exp %49 : vector<64x64xf32>
    %51 = arith.mulf %50, %21 : vector<64x64xf32>
    %cst_23 = arith.constant dense<0.000000e+00> : vector<64xf32>
    %52 = vector.multi_reduction <add>, %51, %cst_23 [1] : vector<64x64xf32> to vector<64xf32>
    %53 = vector.shape_cast %52 : vector<64xf32> to vector<64x1xf32>
    %54 = tpu.reciprocal %53 {approx = true} : vector<64x1xf32> -> vector<64x1xf32>
    %55 = vector.broadcast %54 : vector<64x1xf32> to vector<64x64xf32>
    %56 = arith.mulf %51, %55 : vector<64x64xf32>
    %cst_24 = arith.constant dense<0.000000e+00> : vector<64x32xf32>
    %57 = tpu.matmul %56, %36, %cst_24 {dimension_numbers = #tpu.dot_dimension_numbers<[1], [0], [0], [1], [0, 0, 1, 1], [], []>} : vector<64x64xf32>, vector<64x32xf32>, vector<64x32xf32> -> vector<64x32xf32>
    %58 = vector.broadcast %33 : vector<1x32xf32> to vector<64x32xf32>
    %59 = arith.addf %57, %58 : vector<64x32xf32>
    %cst_25 = arith.constant 0.000000e+00 : f32
    %60 = vector.broadcast %cst_25 : f32 to vector<64x32xf32>
    %61 = arith.cmpf ogt, %59, %60 : vector<64x32xf32>
    %62 = vector.broadcast %34 : vector<1x32xf32> to vector<64x32xf32>
    %63 = arith.mulf %62, %59 : vector<64x32xf32>
    %64 = arith.select %61, %59, %63 : vector<64x32xi1>, vector<64x32xf32>
    %c1 = arith.constant 1 : index
    %c0_26 = arith.constant 0 : index
    %c0_27 = arith.constant 0 : index
    %65 = vector.load %arg4[%c1, %c0_26, %c0_27] : memref<3x32x33xf32, #tpu.memory_space<vmem>>, vector<1x32x33xf32>
    %66 = vector.shape_cast %65 : vector<1x32x33xf32> to vector<32x33xf32>
    %c1_28 = arith.constant 1 : index
    %c0_29 = arith.constant 0 : index
    %c0_30 = arith.constant 0 : index
    %67 = vector.load %arg5[%c1_28, %c0_29, %c0_30] : memref<3x3x32xf32, #tpu.memory_space<vmem>>, vector<1x3x32xf32>
    %68 = vector.shape_cast %67 : vector<1x3x32xf32> to vector<3x32xf32>
    %69 = vector.extract_strided_slice %68 {offsets = [0, 0], sizes = [1, 32], strides = [1, 1]} : vector<3x32xf32> to vector<1x32xf32>
    %70 = vector.extract_strided_slice %68 {offsets = [1, 0], sizes = [1, 32], strides = [1, 1]} : vector<3x32xf32> to vector<1x32xf32>
    %71 = vector.extract_strided_slice %68 {offsets = [2, 0], sizes = [1, 32], strides = [1, 1]} : vector<3x32xf32> to vector<1x32xf32>
    %cst_31 = arith.constant dense<0.000000e+00> : vector<64x33xf32>
    %72 = tpu.matmul %64, %66, %cst_31 {dimension_numbers = #tpu.dot_dimension_numbers<[1], [0], [0], [1], [0, 0, 1, 1], [], []>} : vector<64x32xf32>, vector<32x33xf32>, vector<64x33xf32> -> vector<64x33xf32>
    %73 = vector.extract_strided_slice %72 {offsets = [0, 0], sizes = [64, 32], strides = [1, 1]} : vector<64x33xf32> to vector<64x32xf32>
    %74 = vector.extract_strided_slice %72 {offsets = [0, 32], sizes = [64, 1], strides = [1, 1]} : vector<64x33xf32> to vector<64x1xf32>
    %cst_32 = arith.constant dense<0.000000e+00> : vector<1x64xf32>
    %75 = tpu.matmul %69, %64, %cst_32 {dimension_numbers = #tpu.dot_dimension_numbers<[1], [1], [0], [0], [0, 0, 1, 0], [], []>} : vector<1x32xf32>, vector<64x32xf32>, vector<1x64xf32> -> vector<1x64xf32>
    %76 = vector.broadcast %74 : vector<64x1xf32> to vector<64x64xf32>
    %77 = vector.broadcast %75 : vector<1x64xf32> to vector<64x64xf32>
    %78 = arith.addf %76, %77 : vector<64x64xf32>
    %cst_33 = arith.constant 2.000000e-01 : f32
    %79 = vector.broadcast %cst_33 : f32 to vector<64x64xf32>
    %80 = arith.mulf %79, %78 : vector<64x64xf32>
    %81 = arith.maximumf %78, %80 : vector<64x64xf32>
    %82 = arith.addf %81, %26 : vector<64x64xf32>
    %cst_34 = arith.constant dense<0xFF800000> : vector<64xf32>
    %83 = vector.multi_reduction <maximumf>, %82, %cst_34 [1] : vector<64x64xf32> to vector<64xf32>
    %84 = vector.shape_cast %83 : vector<64xf32> to vector<64x1xf32>
    %85 = vector.broadcast %84 : vector<64x1xf32> to vector<64x64xf32>
    %86 = arith.subf %82, %85 : vector<64x64xf32>
    %87 = math.exp %86 : vector<64x64xf32>
    %88 = arith.mulf %87, %21 : vector<64x64xf32>
    %cst_35 = arith.constant dense<0.000000e+00> : vector<64xf32>
    %89 = vector.multi_reduction <add>, %88, %cst_35 [1] : vector<64x64xf32> to vector<64xf32>
    %90 = vector.shape_cast %89 : vector<64xf32> to vector<64x1xf32>
    %91 = tpu.reciprocal %90 {approx = true} : vector<64x1xf32> -> vector<64x1xf32>
    %92 = vector.broadcast %91 : vector<64x1xf32> to vector<64x64xf32>
    %93 = arith.mulf %88, %92 : vector<64x64xf32>
    %cst_36 = arith.constant dense<0.000000e+00> : vector<64x32xf32>
    %94 = tpu.matmul %93, %73, %cst_36 {dimension_numbers = #tpu.dot_dimension_numbers<[1], [0], [0], [1], [0, 0, 1, 1], [], []>} : vector<64x64xf32>, vector<64x32xf32>, vector<64x32xf32> -> vector<64x32xf32>
    %95 = vector.broadcast %70 : vector<1x32xf32> to vector<64x32xf32>
    %96 = arith.addf %94, %95 : vector<64x32xf32>
    %cst_37 = arith.constant 0.000000e+00 : f32
    %97 = vector.broadcast %cst_37 : f32 to vector<64x32xf32>
    %98 = arith.cmpf ogt, %96, %97 : vector<64x32xf32>
    %99 = vector.broadcast %71 : vector<1x32xf32> to vector<64x32xf32>
    %100 = arith.mulf %99, %96 : vector<64x32xf32>
    %101 = arith.select %98, %96, %100 : vector<64x32xi1>, vector<64x32xf32>
    %c2 = arith.constant 2 : index
    %c0_38 = arith.constant 0 : index
    %c0_39 = arith.constant 0 : index
    %102 = vector.load %arg4[%c2, %c0_38, %c0_39] : memref<3x32x33xf32, #tpu.memory_space<vmem>>, vector<1x32x33xf32>
    %103 = vector.shape_cast %102 : vector<1x32x33xf32> to vector<32x33xf32>
    %c2_40 = arith.constant 2 : index
    %c0_41 = arith.constant 0 : index
    %c0_42 = arith.constant 0 : index
    %104 = vector.load %arg5[%c2_40, %c0_41, %c0_42] : memref<3x3x32xf32, #tpu.memory_space<vmem>>, vector<1x3x32xf32>
    %105 = vector.shape_cast %104 : vector<1x3x32xf32> to vector<3x32xf32>
    %106 = vector.extract_strided_slice %105 {offsets = [0, 0], sizes = [1, 32], strides = [1, 1]} : vector<3x32xf32> to vector<1x32xf32>
    %107 = vector.extract_strided_slice %105 {offsets = [1, 0], sizes = [1, 32], strides = [1, 1]} : vector<3x32xf32> to vector<1x32xf32>
    %108 = vector.extract_strided_slice %105 {offsets = [2, 0], sizes = [1, 32], strides = [1, 1]} : vector<3x32xf32> to vector<1x32xf32>
    %cst_43 = arith.constant dense<0.000000e+00> : vector<64x33xf32>
    %109 = tpu.matmul %101, %103, %cst_43 {dimension_numbers = #tpu.dot_dimension_numbers<[1], [0], [0], [1], [0, 0, 1, 1], [], []>} : vector<64x32xf32>, vector<32x33xf32>, vector<64x33xf32> -> vector<64x33xf32>
    %110 = vector.extract_strided_slice %109 {offsets = [0, 0], sizes = [64, 32], strides = [1, 1]} : vector<64x33xf32> to vector<64x32xf32>
    %111 = vector.extract_strided_slice %109 {offsets = [0, 32], sizes = [64, 1], strides = [1, 1]} : vector<64x33xf32> to vector<64x1xf32>
    %cst_44 = arith.constant dense<0.000000e+00> : vector<1x64xf32>
    %112 = tpu.matmul %106, %101, %cst_44 {dimension_numbers = #tpu.dot_dimension_numbers<[1], [1], [0], [0], [0, 0, 1, 0], [], []>} : vector<1x32xf32>, vector<64x32xf32>, vector<1x64xf32> -> vector<1x64xf32>
    %113 = vector.broadcast %111 : vector<64x1xf32> to vector<64x64xf32>
    %114 = vector.broadcast %112 : vector<1x64xf32> to vector<64x64xf32>
    %115 = arith.addf %113, %114 : vector<64x64xf32>
    %cst_45 = arith.constant 2.000000e-01 : f32
    %116 = vector.broadcast %cst_45 : f32 to vector<64x64xf32>
    %117 = arith.mulf %116, %115 : vector<64x64xf32>
    %118 = arith.maximumf %115, %117 : vector<64x64xf32>
    %119 = arith.addf %118, %26 : vector<64x64xf32>
    %cst_46 = arith.constant dense<0xFF800000> : vector<64xf32>
    %120 = vector.multi_reduction <maximumf>, %119, %cst_46 [1] : vector<64x64xf32> to vector<64xf32>
    %121 = vector.shape_cast %120 : vector<64xf32> to vector<64x1xf32>
    %122 = vector.broadcast %121 : vector<64x1xf32> to vector<64x64xf32>
    %123 = arith.subf %119, %122 : vector<64x64xf32>
    %124 = math.exp %123 : vector<64x64xf32>
    %125 = arith.mulf %124, %21 : vector<64x64xf32>
    %cst_47 = arith.constant dense<0.000000e+00> : vector<64xf32>
    %126 = vector.multi_reduction <add>, %125, %cst_47 [1] : vector<64x64xf32> to vector<64xf32>
    %127 = vector.shape_cast %126 : vector<64xf32> to vector<64x1xf32>
    %128 = tpu.reciprocal %127 {approx = true} : vector<64x1xf32> -> vector<64x1xf32>
    %129 = vector.broadcast %128 : vector<64x1xf32> to vector<64x64xf32>
    %130 = arith.mulf %125, %129 : vector<64x64xf32>
    %cst_48 = arith.constant dense<0.000000e+00> : vector<64x32xf32>
    %131 = tpu.matmul %130, %110, %cst_48 {dimension_numbers = #tpu.dot_dimension_numbers<[1], [0], [0], [1], [0, 0, 1, 1], [], []>} : vector<64x64xf32>, vector<64x32xf32>, vector<64x32xf32> -> vector<64x32xf32>
    %132 = vector.broadcast %107 : vector<1x32xf32> to vector<64x32xf32>
    %133 = arith.addf %131, %132 : vector<64x32xf32>
    %cst_49 = arith.constant 0.000000e+00 : f32
    %134 = vector.broadcast %cst_49 : f32 to vector<64x32xf32>
    %135 = arith.cmpf ogt, %133, %134 : vector<64x32xf32>
    %136 = vector.broadcast %108 : vector<1x32xf32> to vector<64x32xf32>
    %137 = arith.mulf %136, %133 : vector<64x32xf32>
    %138 = arith.select %135, %133, %137 : vector<64x32xi1>, vector<64x32xf32>
    %c0_50 = arith.constant 0 : index
    %c0_51 = arith.constant 0 : index
    %139 = vector.load %arg6[%c0_50, %c0_51] : memref<33x32xf32, #tpu.memory_space<vmem>>, vector<33x32xf32>
    %140 = vector.extract_strided_slice %139 {offsets = [0, 0], sizes = [32, 32], strides = [1, 1]} : vector<33x32xf32> to vector<32x32xf32>
    %cst_52 = arith.constant dense<0.000000e+00> : vector<64x32xf32>
    %141 = tpu.matmul %138, %140, %cst_52 {dimension_numbers = #tpu.dot_dimension_numbers<[1], [0], [0], [1], [0, 0, 1, 1], [], []>} : vector<64x32xf32>, vector<32x32xf32>, vector<64x32xf32> -> vector<64x32xf32>
    %142 = vector.extract_strided_slice %139 {offsets = [32, 0], sizes = [1, 32], strides = [1, 1]} : vector<33x32xf32> to vector<1x32xf32>
    %143 = vector.broadcast %142 : vector<1x32xf32> to vector<64x32xf32>
    %144 = arith.addf %141, %143 : vector<64x32xf32>
    %c0_53 = arith.constant 0 : index
    %c0_54 = arith.constant 0 : index
    %145 = vector.load %arg7[%c0_53, %c0_54] : memref<64x32xf32, #tpu.memory_space<vmem>>, vector<64x32xf32>
    tpu.vector_store %arg7[%c0_53, %c0_54], %144 {strides = array<i32>} : memref<64x32xf32, #tpu.memory_space<vmem>>, vector<64x32xf32>,
    return
  }
  func.func @transform_0(%arg0: i32) -> (i32, i32) {
    %c0_i32 = arith.constant 0 : i32
    %c0_i32_0 = arith.constant 0 : i32
    %c0_i32_1 = arith.constant 0 : i32
    return %c0_i32, %c0_i32_0 : i32, i32
  }
  func.func @transform_1(%arg0: i32) -> (i32, i32) {
    %c0_i32 = arith.constant 0 : i32
    %c0_i32_0 = arith.constant 0 : i32
    %c0_i32_1 = arith.constant 0 : i32
    return %c0_i32, %c0_i32_0 : i32, i32
  }
  func.func @transform_2(%arg0: i32) -> (i32, i32) {
    %c0_i32 = arith.constant 0 : i32
    %c0_i32_0 = arith.constant 0 : i32
    %c0_i32_1 = arith.constant 0 : i32
    return %c0_i32, %c0_i32_0 : i32, i32
  }
  func.func @transform_3(%arg0: i32) -> (i32, i32, i32) {
    %c0_i32 = arith.constant 0 : i32
    %c0_i32_0 = arith.constant 0 : i32
    %c0_i32_1 = arith.constant 0 : i32
    %c0_i32_2 = arith.constant 0 : i32
    return %c0_i32, %c0_i32_0, %c0_i32_1 : i32, i32, i32
  }
  func.func @transform_4(%arg0: i32) -> (i32, i32, i32) {
    %c0_i32 = arith.constant 0 : i32
    %c0_i32_0 = arith.constant 0 : i32
    %c0_i32_1 = arith.constant 0 : i32
    %c0_i32_2 = arith.constant 0 : i32
    return %c0_i32, %c0_i32_0, %c0_i32_1 : i32, i32, i32
  }
  func.func @transform_5(%arg0: i32) -> (i32, i32) {
    %c0_i32 = arith.constant 0 : i32
    %c0_i32_0 = arith.constant 0 : i32
    %c0_i32_1 = arith.constant 0 : i32
    return %c0_i32, %c0_i32_0 : i32, i32
  }
  func.func @transform_6(%arg0: i32) -> (i32, i32) {
    %c0_i32 = arith.constant 0 : i32
    %c0_i32_0 = arith.constant 0 : i32
    %c0_i32_1 = arith.constant 0 : i32
    return %c0_i32, %c0_i32_0 : i32, i32
  }
}

</mosaic_0001>

<llo_original>
// kernel: tpu_custom_call.1
$region0: #{tpu_custom_call.1}
  #allocation0 [shape = 'u32[]', space=smem, size = 0x4, offset = 0x4, fixed_abs, tag = 'smem constant byte address 0x4 - core index']
  #allocation1 [shape = 'u32[144,128]{1,0:T(1,128)}', space=vmem, size = 0x12000, scoped, tag = 'internal scratch']
  %s0 = inlined_call_operand.vmem [shape: f32[64,32], index: 0, kind: input, shape index: {}]
  %s1 = inlined_call_operand.vmem [shape: s32[256,1], index: 1, kind: input, shape index: {}]
  %s2 = inlined_call_operand.vmem [shape: s32[1,256], index: 2, kind: input, shape index: {}]
  %s3 = inlined_call_operand.vmem [shape: f32[3,32,33], index: 3, kind: input, shape index: {}]
  %s4 = inlined_call_operand.vmem [shape: f32[3,3,32], index: 4, kind: input, shape index: {}]
  %s5 = inlined_call_operand.vmem [shape: f32[33,32], index: 5, kind: input, shape index: {}]
  %s6 = inlined_call_operand.vmem [shape: f32[64,32], index: 6, kind: output, shape index: {}]
  %s7 = sld [smem:[#allocation0]]
  $region34: #{tpu_custom_call.1} parent=0
    _
  %s9 = ssub.s32 1, %s7
  %s10 = scalar_select 0, %s9, %s7
  // Predicated region
  $region2: #{tpu_custom_call.1} parent=0 // pred_check
    _
  $region3: #{tpu_custom_call.1} parent=0 // pred_check_branch
    %12 = sbr.rel (0) target = $region5
  $region4: #{tpu_custom_call.1} parent=0 // pred_region
    _
  $region5: #{tpu_custom_call.1} parent=0 // pred_fallthru
    _
  // Predicated region
  $region6: #{tpu_custom_call.1} parent=0 // pred_check
    _
  $region7: #{tpu_custom_call.1} parent=0 // pred_check_branch
    %14 = sbr.rel (0) target = $region9
  $region8: #{tpu_custom_call.1} parent=0 // pred_region
    _
  $region9: #{tpu_custom_call.1} parent=0 // pred_fallthru
    _
  // Predicated region
  $region10: #{tpu_custom_call.1} parent=0 // pred_check
    _
  $region11: #{tpu_custom_call.1} parent=0 // pred_check_branch
    %16 = sbr.rel (0) target = $region13
  $region12: #{tpu_custom_call.1} parent=0 // pred_region
    _
  $region13: #{tpu_custom_call.1} parent=0 // pred_fallthru
    _
  // Predicated region
  $region14: #{tpu_custom_call.1} parent=0 // pred_check
    _
  $region15: #{tpu_custom_call.1} parent=0 // pred_check_branch
    %18 = sbr.rel (0) target = $region17
  $region16: #{tpu_custom_call.1} parent=0 // pred_region
    _
  $region17: #{tpu_custom_call.1} parent=0 // pred_fallthru
    _
  // Predicated region
  $region18: #{tpu_custom_call.1} parent=0 // pred_check
    _
  $region19: #{tpu_custom_call.1} parent=0 // pred_check_branch
    %20 = sbr.rel (0) target = $region21
  $region20: #{tpu_custom_call.1} parent=0 // pred_region
    _
  $region21: #{tpu_custom_call.1} parent=0 // pred_fallthru
    _
  // Predicated region
  $region22: #{tpu_custom_call.1} parent=0 // pred_check
    _
  $region23: #{tpu_custom_call.1} parent=0 // pred_check_branch
    %22 = sbr.rel (0) target = $region25
  $region24: #{tpu_custom_call.1} parent=0 // pred_region
    _
  $region25: #{tpu_custom_call.1} parent=0 // pred_fallthru
    _
  %v24 = vld [vmem:[%s1] sm:$0xff]
  %v25 = vld [vmem:[%s1 + $0x8] sm:$0xff]
  %v26 = vld [vmem:[%s1 + $0x10] sm:$0xff]
  %v27 = vld [vmem:[%s1 + $0x18] sm:$0xff]
  %v28 = vld [vmem:[%s1 + $0x20] sm:$0xff]
  %v29 = vld [vmem:[%s1 + $0x28] sm:$0xff]
  %v30 = vld [vmem:[%s1 + $0x30] sm:$0xff]
  %v31 = vld [vmem:[%s1 + $0x38] sm:$0xff]
  %v32 = vld [vmem:[%s1 + $0x40] sm:$0xff]
  %v33 = vld [vmem:[%s1 + $0x48] sm:$0xff]
  %v34 = vld [vmem:[%s1 + $0x50] sm:$0xff]
  %v35 = vld [vmem:[%s1 + $0x58] sm:$0xff]
  %v36 = vld [vmem:[%s1 + $0x60] sm:$0xff]
  %v37 = vld [vmem:[%s1 + $0x68] sm:$0xff]
  %v38 = vld [vmem:[%s1 + $0x70] sm:$0xff]
  %v39 = vld [vmem:[%s1 + $0x78] sm:$0xff]
  %v40 = vld [vmem:[%s1 + $0x80] sm:$0xff]
  %v41 = vld [vmem:[%s1 + $0x88] sm:$0xff]
  %v42 = vld [vmem:[%s1 + $0x90] sm:$0xff]
  %v43 = vld [vmem:[%s1 + $0x98] sm:$0xff]
  %v44 = vld [vmem:[%s1 + $0xa0] sm:$0xff]
  %v45 = vld [vmem:[%s1 + $0xa8] sm:$0xff]
  %v46 = vld [vmem:[%s1 + $0xb0] sm:$0xff]
  %v47 = vld [vmem:[%s1 + $0xb8] sm:$0xff]
  %v48 = vld [vmem:[%s1 + $0xc0] sm:$0xff]
  %v49 = vld [vmem:[%s1 + $0xc8] sm:$0xff]
  %v50 = vld [vmem:[%s1 + $0xd0] sm:$0xff]
  %v51 = vld [vmem:[%s1 + $0xd8] sm:$0xff]
  %v52 = vld [vmem:[%s1 + $0xe0] sm:$0xff]
  %v53 = vld [vmem:[%s1 + $0xe8] sm:$0xff]
  %v54 = vld [vmem:[%s1 + $0xf0] sm:$0xff]
  %v55 = vld [vmem:[%s1 + $0xf8] sm:$0xff]
  %v56 = vld [vmem:[%s2] sm:$0x3]
  %v57 = vlaneseq
  %v58 = vshrl.u32 %v57, 7
  %v59 = vadd.s32 %v58, 8
  %v60 = vadd.s32 %v58, 16
  %v61 = vadd.s32 %v58, 24
  %v62 = vadd.s32 %v58, 32
  %v63 = vadd.s32 %v58, 40
  %v64 = vadd.s32 %v58, 48
  %v65 = vadd.s32 %v58, 56
  %v66 = vlaneseq
  %v67 = vshrl.u32 %v66, 7
  %v68 = vsub.s32 0, %v67
  %v69 = vrot.slane %v56, %v68
  %v70 = vlaneseq
  %v71 = vshrl.u32 %v70, 7
  %v72 = vsub.s32 1, %v71
  %v73 = vrot.slane %v56, %v72
  %vm74 = vcmp.eq.s32.totalorder %v58, %v69
  %vm75 = vcmp.eq.s32.totalorder %v58, %v73
  %vm76 = vcmp.eq.s32.totalorder %v59, %v69
  %vm77 = vcmp.eq.s32.totalorder %v59, %v73
  %vm78 = vcmp.eq.s32.totalorder %v60, %v69
  %vm79 = vcmp.eq.s32.totalorder %v60, %v73
  %vm80 = vcmp.eq.s32.totalorder %v61, %v69
  %vm81 = vcmp.eq.s32.totalorder %v61, %v73
  %vm82 = vcmp.eq.s32.totalorder %v62, %v69
  %vm83 = vcmp.eq.s32.totalorder %v62, %v73
  %vm84 = vcmp.eq.s32.totalorder %v63, %v69
  %vm85 = vcmp.eq.s32.totalorder %v63, %v73
  %vm86 = vcmp.eq.s32.totalorder %v64, %v69
  %vm87 = vcmp.eq.s32.totalorder %v64, %v73
  %vm88 = vcmp.eq.s32.totalorder %v65, %v69
  %vm89 = vcmp.eq.s32.totalorder %v65, %v73
  %v90 = vsel %vm74, 1.0, 0.0
  %v91 = vsel %vm75, 1.0, 0.0
  %v92 = vsel %vm76, 1.0, 0.0
  %v93 = vsel %vm77, 1.0, 0.0
  %v94 = vsel %vm78, 1.0, 0.0
  %v95 = vsel %vm79, 1.0, 0.0
  %v96 = vsel %vm80, 1.0, 0.0
  %v97 = vsel %vm81, 1.0, 0.0
  %v98 = vsel %vm82, 1.0, 0.0
  %v99 = vsel %vm83, 1.0, 0.0
  %v100 = vsel %vm84, 1.0, 0.0
  %v101 = vsel %vm85, 1.0, 0.0
  %v102 = vsel %vm86, 1.0, 0.0
  %v103 = vsel %vm87, 1.0, 0.0
  %v104 = vsel %vm88, 1.0, 0.0
  %v105 = vsel %vm89, 1.0, 0.0
  %v106 = vpack.c.bf16 %v92, %v90
  %v107 = vpack.c.bf16 %v93, %v91
  %v108 = vpack.c.bf16 %v96, %v94
  %v109 = vpack.c.bf16 %v97, %v95
  %v110 = vpack.c.bf16 %v100, %v98
  %v111 = vpack.c.bf16 %v101, %v99
  %v112 = vpack.c.bf16 %v104, %v102
  %v113 = vpack.c.bf16 %v105, %v103
  %v114 = vlaneseq
  %v115 = vand.u32 %v114, 127
  %116 = vset.pattern.permute.xlu0 0
  %117 = vperm.xlu0 %116, %v24
  %v118 = vpop.permute.xlu0 %117
  %119 = vset.pattern.permute.xlu0 0
  %120 = vperm.xlu0 %119, %v25
  %v121 = vpop.permute.xlu0 %120
  %122 = vset.pattern.permute.xlu0 0
  %123 = vperm.xlu0 %122, %v26
  %v124 = vpop.permute.xlu0 %123
  %125 = vset.pattern.permute.xlu0 0
  %126 = vperm.xlu0 %125, %v27
  %v127 = vpop.permute.xlu0 %126
  %128 = vset.pattern.permute.xlu0 0
  %129 = vperm.xlu0 %128, %v28
  %v130 = vpop.permute.xlu0 %129
  %131 = vset.pattern.permute.xlu0 0
  %132 = vperm.xlu0 %131, %v29
  %v133 = vpop.permute.xlu0 %132
  %134 = vset.pattern.permute.xlu0 0
  %135 = vperm.xlu0 %134, %v30
  %v136 = vpop.permute.xlu0 %135
  %137 = vset.pattern.permute.xlu0 0
  %138 = vperm.xlu0 %137, %v31
  %v139 = vpop.permute.xlu0 %138
  %140 = vset.pattern.permute.xlu0 0
  %141 = vperm.xlu0 %140, %v32
  %v142 = vpop.permute.xlu0 %141
  %143 = vset.pattern.permute.xlu0 0
  %144 = vperm.xlu0 %143, %v33
  %v145 = vpop.permute.xlu0 %144
  %146 = vset.pattern.permute.xlu0 0
  %147 = vperm.xlu0 %146, %v34
  %v148 = vpop.permute.xlu0 %147
  %149 = vset.pattern.permute.xlu0 0
  %150 = vperm.xlu0 %149, %v35
  %v151 = vpop.permute.xlu0 %150
  %152 = vset.pattern.permute.xlu0 0
  %153 = vperm.xlu0 %152, %v36
  %v154 = vpop.permute.xlu0 %153
  %155 = vset.pattern.permute.xlu0 0
  %156 = vperm.xlu0 %155, %v37
  %v157 = vpop.permute.xlu0 %156
  %158 = vset.pattern.permute.xlu0 0
  %159 = vperm.xlu0 %158, %v38
  %v160 = vpop.permute.xlu0 %159
  %161 = vset.pattern.permute.xlu0 0
  %162 = vperm.xlu0 %161, %v39
  %v163 = vpop.permute.xlu0 %162
  %164 = vset.pattern.permute.xlu0 0
  %165 = vperm.xlu0 %164, %v40
  %v166 = vpop.permute.xlu0 %165
  %167 = vset.pattern.permute.xlu0 0
  %168 = vperm.xlu0 %167, %v41
  %v169 = vpop.permute.xlu0 %168
  %170 = vset.pattern.permute.xlu0 0
  %171 = vperm.xlu0 %170, %v42
  %v172 = vpop.permute.xlu0 %171
  %173 = vset.pattern.permute.xlu0 0
  %174 = vperm.xlu0 %173, %v43
  %v175 = vpop.permute.xlu0 %174
  %176 = vset.pattern.permute.xlu0 0
  %177 = vperm.xlu0 %176, %v44
  %v178 = vpop.permute.xlu0 %177
  %179 = vset.pattern.permute.xlu0 0
  %180 = vperm.xlu0 %179, %v45
  %v181 = vpop.permute.xlu0 %180
  %182 = vset.pattern.permute.xlu0 0
  %183 = vperm.xlu0 %182, %v46
  %v184 = vpop.permute.xlu0 %183
  %185 = vset.pattern.permute.xlu0 0
  %186 = vperm.xlu0 %185, %v47
  %v187 = vpop.permute.xlu0 %186
  %188 = vset.pattern.permute.xlu0 0
  %189 = vperm.xlu0 %188, %v48
  %v190 = vpop.permute.xlu0 %189
  %191 = vset.pattern.permute.xlu0 0
  %192 = vperm.xlu0 %191, %v49
  %v193 = vpop.permute.xlu0 %192
  %194 = vset.pattern.permute.xlu0 0
  %195 = vperm.xlu0 %194, %v50
  %v196 = vpop.permute.xlu0 %195
  %197 = vset.pattern.permute.xlu0 0
  %198 = vperm.xlu0 %197, %v51
  %v199 = vpop.permute.xlu0 %198
  %200 = vset.pattern.permute.xlu0 0
  %201 = vperm.xlu0 %200, %v52
  %v202 = vpop.permute.xlu0 %201
  %203 = vset.pattern.permute.xlu0 0
  %204 = vperm.xlu0 %203, %v53
  %v205 = vpop.permute.xlu0 %204
  %206 = vset.pattern.permute.xlu0 0
  %207 = vperm.xlu0 %206, %v54
  %v208 = vpop.permute.xlu0 %207
  %209 = vset.pattern.permute.xlu0 0
  %210 = vperm.xlu0 %209, %v55
  %v211 = vpop.permute.xlu0 %210
  %vm212 = vcmp.eq.s32.totalorder %v115, %v118
  %vm213 = vcmp.eq.s32.totalorder %v115, %v121
  %vm214 = vcmp.eq.s32.totalorder %v115, %v124
  %vm215 = vcmp.eq.s32.totalorder %v115, %v127
  %vm216 = vcmp.eq.s32.totalorder %v115, %v130
  %vm217 = vcmp.eq.s32.totalorder %v115, %v133
  %vm218 = vcmp.eq.s32.totalorder %v115, %v136
  %vm219 = vcmp.eq.s32.totalorder %v115, %v139
  %vm220 = vcmp.eq.s32.totalorder %v115, %v142
  %vm221 = vcmp.eq.s32.totalorder %v115, %v145
  %vm222 = vcmp.eq.s32.totalorder %v115, %v148
  %vm223 = vcmp.eq.s32.totalorder %v115, %v151
  %vm224 = vcmp.eq.s32.totalorder %v115, %v154
  %vm225 = vcmp.eq.s32.totalorder %v115, %v157
  %vm226 = vcmp.eq.s32.totalorder %v115, %v160
  %vm227 = vcmp.eq.s32.totalorder %v115, %v163
  %vm228 = vcmp.eq.s32.totalorder %v115, %v166
  %vm229 = vcmp.eq.s32.totalorder %v115, %v169
  %vm230 = vcmp.eq.s32.totalorder %v115, %v172
  %vm231 = vcmp.eq.s32.totalorder %v115, %v175
  %vm232 = vcmp.eq.s32.totalorder %v115, %v178
  %vm233 = vcmp.eq.s32.totalorder %v115, %v181
  %vm234 = vcmp.eq.s32.totalorder %v115, %v184
  %vm235 = vcmp.eq.s32.totalorder %v115, %v187
  %vm236 = vcmp.eq.s32.totalorder %v115, %v190
  %vm237 = vcmp.eq.s32.totalorder %v115, %v193
  %vm238 = vcmp.eq.s32.totalorder %v115, %v196
  %vm239 = vcmp.eq.s32.totalorder %v115, %v199
  %vm240 = vcmp.eq.s32.totalorder %v115, %v202
  %vm241 = vcmp.eq.s32.totalorder %v115, %v205
  %vm242 = vcmp.eq.s32.totalorder %v115, %v208
  %vm243 = vcmp.eq.s32.totalorder %v115, %v211
  %v244 = vsel %vm212, 1.0, 0.0
  %v245 = vsel %vm213, 1.0, 0.0
  %v246 = vsel %vm214, 1.0, 0.0
  %v247 = vsel %vm215, 1.0, 0.0
  %v248 = vsel %vm216, 1.0, 0.0
  %v249 = vsel %vm217, 1.0, 0.0
  %v250 = vsel %vm218, 1.0, 0.0
  %v251 = vsel %vm219, 1.0, 0.0
  %v252 = vsel %vm220, 1.0, 0.0
  %v253 = vsel %vm221, 1.0, 0.0
  %v254 = vsel %vm222, 1.0, 0.0
  %v255 = vsel %vm223, 1.0, 0.0
  %v256 = vsel %vm224, 1.0, 0.0
  %v257 = vsel %vm225, 1.0, 0.0
  %v258 = vsel %vm226, 1.0, 0.0
  %v259 = vsel %vm227, 1.0, 0.0
  %v260 = vsel %vm228, 1.0, 0.0
  %v261 = vsel %vm229, 1.0, 0.0
  %v262 = vsel %vm230, 1.0, 0.0
  %v263 = vsel %vm231, 1.0, 0.0
  %v264 = vsel %vm232, 1.0, 0.0
  %v265 = vsel %vm233, 1.0, 0.0
  %v266 = vsel %vm234, 1.0, 0.0
  %v267 = vsel %vm235, 1.0, 0.0
  %v268 = vsel %vm236, 1.0, 0.0
  %v269 = vsel %vm237, 1.0, 0.0
  %v270 = vsel %vm238, 1.0, 0.0
  %v271 = vsel %vm239, 1.0, 0.0
  %v272 = vsel %vm240, 1.0, 0.0
  %v273 = vsel %vm241, 1.0, 0.0
  %v274 = vsel %vm242, 1.0, 0.0
  %v275 = vsel %vm243, 1.0, 0.0
  %v276 = vpack.c.bf16 %v245, %v244
  %v277 = vpack.c.bf16 %v247, %v246
  %v278 = vpack.c.bf16 %v249, %v248
  %v279 = vpack.c.bf16 %v251, %v250
  %v280 = vpack.c.bf16 %v253, %v252
  %v281 = vpack.c.bf16 %v255, %v254
  %v282 = vpack.c.bf16 %v257, %v256
  %v283 = vpack.c.bf16 %v259, %v258
  %v284 = vpack.c.bf16 %v261, %v260
  %v285 = vpack.c.bf16 %v263, %v262
  %v286 = vpack.c.bf16 %v265, %v264
  %v287 = vpack.c.bf16 %v267, %v266
  %v288 = vpack.c.bf16 %v269, %v268
  %v289 = vpack.c.bf16 %v271, %v270
  %v290 = vpack.c.bf16 %v273, %v272
  %v291 = vpack.c.bf16 %v275, %v274
  %292 = vmatprep.subr.bf16.mxu0 0
  %293 = vmatpush1.bf16.msra.mxu0 %v276
  %294 = vmatprep.subr.bf16.mxu0 0
  %295 = vmatpush1.bf16.msra.mxu0 %v277
  %296 = vmatprep.subr.bf16.mxu0 0
  %297 = vmatpush1.bf16.msra.mxu0 %v278
  %298 = vmatprep.subr.bf16.mxu0 0
  %299 = vmatpush1.bf16.msra.mxu0 %v279
  %300 = vmatprep.subr.bf16.mxu0 0
  %301 = vmatpush1.bf16.msra.mxu0 %v280
  %302 = vmatprep.subr.bf16.mxu0 0
  %303 = vmatpush1.bf16.msra.mxu0 %v281
  %304 = vmatprep.subr.bf16.mxu0 0
  %305 = vmatpush1.bf16.msra.mxu0 %v282
  %306 = vmatprep.subr.bf16.mxu0 0
  %307 = vmatpush1.bf16.msra.mxu0 %v283
  %308 = vmatprep.subr.bf16.mxu0 0
  %309 = vmatpush1.bf16.msra.mxu0 %v284
  %310 = vmatprep.subr.bf16.mxu0 0
  %311 = vmatpush1.bf16.msra.mxu0 %v285
  %312 = vmatprep.subr.bf16.mxu0 0
  %313 = vmatpush1.bf16.msra.mxu0 %v286
  %314 = vmatprep.subr.bf16.mxu0 0
  %315 = vmatpush1.bf16.msra.mxu0 %v287
  %316 = vmatprep.subr.bf16.mxu0 0
  %317 = vmatpush1.bf16.msra.mxu0 %v288
  %318 = vmatprep.subr.bf16.mxu0 0
  %319 = vmatpush1.bf16.msra.mxu0 %v289
  %320 = vmatprep.subr.bf16.mxu0 0
  %321 = vmatpush1.bf16.msra.mxu0 %v290
  %322 = vmatprep.subr.bf16.mxu0 0
  %323 = vmatpush1.bf16.msra.mxu0 %v291
  %324 = vmatprep.mubr.bf16.mxu0 %v107
  %325 = vmatmul.mubr.bf16.gmra.mrb[0].mxu0 %v106
  %v326 = vpop.f32.mrb[0].mxu0
  %v327 = vadd.f32 0.0, %v326
  %v328 = vpop.f32.mrb[0].mxu0
  %v329 = vpop.f32.mrb[0].mxu0
  %v330 = vadd.f32 0.0, %v329
  %v331 = vpop.f32.mrb[0].mxu0
  %332 = vmatprep.mubr.bf16.mxu0 %v109
  %333 = vmatmul.mubr.bf16.gmra.mrb[0].mxu0 %v108
  %v334 = vpop.f32.mrb[0].mxu0
  %v335 = vadd.f32 0.0, %v334
  %v336 = vpop.f32.mrb[0].mxu0
  %v337 = vpop.f32.mrb[0].mxu0
  %v338 = vadd.f32 0.0, %v337
  %v339 = vpop.f32.mrb[0].mxu0
  %340 = vmatprep.mubr.bf16.mxu0 %v111
  %341 = vmatmul.mubr.bf16.gmra.mrb[0].mxu0 %v110
  %v342 = vpop.f32.mrb[0].mxu0
  %v343 = vadd.f32 0.0, %v342
  %v344 = vpop.f32.mrb[0].mxu0
  %v345 = vpop.f32.mrb[0].mxu0
  %v346 = vadd.f32 0.0, %v345
  %v347 = vpop.f32.mrb[0].mxu0
  %348 = vmatprep.mubr.bf16.mxu0 %v113
  %349 = vmatmul.mubr.bf16.gmra.mrb[0].mxu0 %v112
  %v350 = vpop.f32.mrb[0].mxu0
  %v351 = vadd.f32 0.0, %v350
  %v352 = vpop.f32.mrb[0].mxu0
  %v353 = vpop.f32.mrb[0].mxu0
  %v354 = vadd.f32 0.0, %v353
  %v355 = vpop.f32.mrb[0].mxu0
  %356 = vdwg.mxu0
  %vm357 = vcmp.eq.s32.totalorder %v58, %v115
  %vm358 = vcmp.eq.s32.totalorder %v59, %v115
  %vm359 = vcmp.eq.s32.totalorder %v60, %v115
  %vm360 = vcmp.eq.s32.totalorder %v61, %v115
  %vm361 = vcmp.eq.s32.totalorder %v62, %v115
  %vm362 = vcmp.eq.s32.totalorder %v63, %v115
  %vm363 = vcmp.eq.s32.totalorder %v64, %v115
  %vm364 = vcmp.eq.s32.totalorder %v65, %v115
  %v365 = vsel %vm357, 1.0, %v327
  %v366 = vsel %vm358, 1.0, %v330
  %v367 = vsel %vm359, 1.0, %v335
  %v368 = vsel %vm360, 1.0, %v338
  %v369 = vsel %vm361, 1.0, %v343
  %v370 = vsel %vm362, 1.0, %v346
  %v371 = vsel %vm363, 1.0, %v351
  %v372 = vsel %vm364, 1.0, %v354
  %vm373 = vcmp.gt.f32.partialorder %v365, 0.0
  %vm374 = vcmp.gt.f32.partialorder %v366, 0.0
  %vm375 = vcmp.gt.f32.partialorder %v367, 0.0
  %vm376 = vcmp.gt.f32.partialorder %v368, 0.0
  %vm377 = vcmp.gt.f32.partialorder %v369, 0.0
  %vm378 = vcmp.gt.f32.partialorder %v370, 0.0
  %vm379 = vcmp.gt.f32.partialorder %v371, 0.0
  %vm380 = vcmp.gt.f32.partialorder %v372, 0.0
  %v381 = vsel %vm373, 0.0, -1e+30
  %v382 = vsel %vm374, 0.0, -1e+30
  %v383 = vsel %vm375, 0.0, -1e+30
  %v384 = vsel %vm376, 0.0, -1e+30
  %v385 = vsel %vm377, 0.0, -1e+30
  %v386 = vsel %vm378, 0.0, -1e+30
  %v387 = vsel %vm379, 0.0, -1e+30
  %v388 = vsel %vm380, 0.0, -1e+30
  %v389 = vld [vmem:[%s0] sm:$0xff]
  %v390 = vld [vmem:[%s0 + $0x8] sm:$0xff]
  %v391 = vld [vmem:[%s0 + $0x10] sm:$0xff]
  %v392 = vld [vmem:[%s0 + $0x18] sm:$0xff]
  %v393 = vld [vmem:[%s0 + $0x20] sm:$0xff]
  %v394 = vld [vmem:[%s0 + $0x28] sm:$0xff]
  %v395 = vld [vmem:[%s0 + $0x30] sm:$0xff]
  %v396 = vld [vmem:[%s0 + $0x38] sm:$0xff]
  %v397 = vld [vmem:[%s3] sm:$0xff]
  %v398 = vld [vmem:[%s3 + $0x8] sm:$0xff]
  %v399 = vld [vmem:[%s3 + $0x10] sm:$0xff]
  %v400 = vld [vmem:[%s3 + $0x18] sm:$0xff]
  %v401 = vld [vmem:[%s4] sm:$0x7]
  %vm402 = vcmask 261120
  %v404 = vsel %vm402, %v389, 0
  %v407 = vsel %vm402, %v390, 0
  %v410 = vsel %vm402, %v391, 0
  %v413 = vsel %vm402, %v392, 0
  %v416 = vsel %vm402, %v393, 0
  %v419 = vsel %vm402, %v394, 0
  %v422 = vsel %vm402, %v395, 0
  %v425 = vsel %vm402, %v396, 0
  %427 = vmatprep.subr.mxu0 0.0
  %428 = vmatpush1.msra.mxu0 %v397
  %429 = vmatprep.subr.mxu0 0.0
  %430 = vmatpush1.msra.mxu0 %v398
  %431 = vmatprep.subr.mxu0 0.0
  %432 = vmatpush1.msra.mxu0 %v399
  %433 = vmatprep.subr.mxu0 0.0
  %434 = vmatpush1.msra.mxu0 %v400
  %435 = vmatprep.subr.mxu0 0.0
  %436 = vmatpush1.msra.mxu0 0.0
  %437 = vmatprep.subr.mxu0 0.0
  %438 = vmatpush1.msra.mxu0 0.0
  %439 = vmatprep.subr.mxu0 0.0
  %440 = vmatpush1.msra.mxu0 0.0
  %441 = vmatprep.subr.mxu0 0.0
  %442 = vmatpush1.msra.mxu0 0.0
  %443 = vmatprep.subr.mxu0 0.0
  %444 = vmatpush1.msra.mxu0 0.0
  %445 = vmatprep.subr.mxu0 0.0
  %446 = vmatpush1.msra.mxu0 0.0
  %447 = vmatprep.subr.mxu0 0.0
  %448 = vmatpush1.msra.mxu0 0.0
  %449 = vmatprep.subr.mxu0 0.0
  %450 = vmatpush1.msra.mxu0 0.0
  %451 = vmatprep.subr.mxu0 0.0
  %452 = vmatpush1.msra.mxu0 0.0
  %453 = vmatprep.subr.mxu0 0.0
  %454 = vmatpush1.msra.mxu0 0.0
  %455 = vmatprep.subr.mxu0 0.0
  %456 = vmatpush1.msra.mxu0 0.0
  %457 = vmatprep.subr.mxu0 0.0
  %458 = vmatpush1.msra.mxu0 0.0
  %459 = vmatprep.subr.mxu0 0.0
  %460 = vmatpush1.msra.mxu0 0.0
  %461 = vmatprep.subr.mxu0 0.0
  %462 = vmatpush1.msra.mxu0 0.0
  %463 = vmatprep.subr.mxu0 0.0
  %464 = vmatpush1.msra.mxu0 0.0
  %465 = vmatprep.subr.mxu0 0.0
  %466 = vmatpush1.msra.mxu0 0.0
  %467 = vmatprep.subr.mxu0 0.0
  %468 = vmatpush1.msra.mxu0 0.0
  %469 = vmatprep.subr.mxu0 0.0
  %470 = vmatpush1.msra.mxu0 0.0
  %471 = vmatprep.subr.mxu0 0.0
  %472 = vmatpush1.msra.mxu0 0.0
  %473 = vmatprep.subr.mxu0 0.0
  %474 = vmatpush1.msra.mxu0 0.0
  %475 = vmatprep.subr.mxu0 0.0
  %476 = vmatpush1.msra.mxu0 0.0
  %477 = vmatprep.subr.mxu0 0.0
  %478 = vmatpush1.msra.mxu0 0.0
  %479 = vmatprep.subr.mxu0 0.0
  %480 = vmatpush1.msra.mxu0 0.0
  %481 = vmatprep.subr.mxu0 0.0
  %482 = vmatpush1.msra.mxu0 0.0
  %483 = vmatprep.subr.mxu0 0.0
  %484 = vmatpush1.msra.mxu0 0.0
  %485 = vmatprep.subr.mxu0 0.0
  %486 = vmatpush1.msra.mxu0 0.0
  %487 = vmatprep.subr.mxu0 0.0
  %488 = vmatpush1.msra.mxu0 0.0
  %489 = vmatprep.subr.mxu0 0.0
  %490 = vmatpush1.msra.mxu0 0.0
  %491 = vmatprep.mubr.f32.mxu0 0.0
  %492 = vmatmul.mubr.f32.gmra.mrb[0].mxu0 %v404
  %v493 = vpop.f32.mrb[0].mxu0
  %v494 = vadd.f32 0.0, %v493
  %v495 = vpop.f32.mrb[0].mxu0
  %496 = vmatprep.mubr.f32.mxu0 0.0
  %497 = vmatmul.mubr.f32.gmra.mrb[0].mxu0 %v407
  %v498 = vpop.f32.mrb[0].mxu0
  %v499 = vadd.f32 0.0, %v498
  %v500 = vpop.f32.mrb[0].mxu0
  %501 = vmatprep.mubr.f32.mxu0 0.0
  %502 = vmatmul.mubr.f32.gmra.mrb[0].mxu0 %v410
  %v503 = vpop.f32.mrb[0].mxu0
  %v504 = vadd.f32 0.0, %v503
  %v505 = vpop.f32.mrb[0].mxu0
  %506 = vmatprep.mubr.f32.mxu0 0.0
  %507 = vmatmul.mubr.f32.gmra.mrb[0].mxu0 %v413
  %v508 = vpop.f32.mrb[0].mxu0
  %v509 = vadd.f32 0.0, %v508
  %v510 = vpop.f32.mrb[0].mxu0
  %511 = vmatprep.mubr.f32.mxu0 0.0
  %512 = vmatmul.mubr.f32.gmra.mrb[0].mxu0 %v416
  %v513 = vpop.f32.mrb[0].mxu0
  %v514 = vadd.f32 0.0, %v513
  %v515 = vpop.f32.mrb[0].mxu0
  %516 = vmatprep.mubr.f32.mxu0 0.0
  %517 = vmatmul.mubr.f32.gmra.mrb[0].mxu0 %v419
  %v518 = vpop.f32.mrb[0].mxu0
  %v519 = vadd.f32 0.0, %v518
  %v520 = vpop.f32.mrb[0].mxu0
  %521 = vmatprep.mubr.f32.mxu0 0.0
  %522 = vmatmul.mubr.f32.gmra.mrb[0].mxu0 %v422
  %v523 = vpop.f32.mrb[0].mxu0
  %v524 = vadd.f32 0.0, %v523
  %v525 = vpop.f32.mrb[0].mxu0
  %526 = vmatprep.mubr.f32.mxu0 0.0
  %527 = vmatmul.mubr.f32.gmra.mrb[0].mxu0 %v425
  %v528 = vpop.f32.mrb[0].mxu0
  %v529 = vadd.f32 0.0, %v528
  %v530 = vpop.f32.mrb[0].mxu0
  %531 = vdwg.mxu0
  %v533 = vsel %vm402, %v401, 0
  %535 = vmatprep.subr.mxu0 0.0
  %536 = vmatpush1.xpose.msra.mxu0 %v404
  %537 = vmatprep.subr.mxu0 0.0
  %538 = vmatpush1.xpose.msra.mxu0 %v407
  %539 = vmatprep.subr.mxu0 0.0
  %540 = vmatpush1.xpose.msra.mxu0 %v410
  %541 = vmatprep.subr.mxu0 0.0
  %542 = vmatpush1.xpose.msra.mxu0 %v413
  %543 = vmatprep.subr.mxu0 0.0
  %544 = vmatpush1.xpose.msra.mxu0 %v416
  %545 = vmatprep.subr.mxu0 0.0
  %546 = vmatpush1.xpose.msra.mxu0 %v419
  %547 = vmatprep.subr.mxu0 0.0
  %548 = vmatpush1.xpose.msra.mxu0 %v422
  %549 = vmatprep.subr.mxu0 0.0
  %550 = vmatpush1.xpose.msra.mxu0 %v425
  %551 = vmatprep.subr.mxu0 0.0
  %552 = vmatpush1.xpose.msra.mxu0 0.0
  %553 = vmatprep.subr.mxu0 0.0
  %554 = vmatpush1.xpose.msra.mxu0 0.0
  %555 = vmatprep.subr.mxu0 0.0
  %556 = vmatpush1.xpose.msra.mxu0 0.0
  %557 = vmatprep.subr.mxu0 0.0
  %558 = vmatpush1.xpose.msra.mxu0 0.0
  %559 = vmatprep.subr.mxu0 0.0
  %560 = vmatpush1.xpose.msra.mxu0 0.0
  %561 = vmatprep.subr.mxu0 0.0
  %562 = vmatpush1.xpose.msra.mxu0 0.0
  %563 = vmatprep.subr.mxu0 0.0
  %564 = vmatpush1.xpose.msra.mxu0 0.0
  %565 = vmatprep.subr.mxu0 0.0
  %566 = vmatpush1.xpose.msra.mxu0 0.0
  %567 = vmatprep.subr.mxu0 0.0
  %568 = vmatpush1.xpose.msra.mxu0 0.0
  %569 = vmatprep.subr.mxu0 0.0
  %570 = vmatpush1.xpose.msra.mxu0 0.0
  %571 = vmatprep.subr.mxu0 0.0
  %572 = vmatpush1.xpose.msra.mxu0 0.0
  %573 = vmatprep.subr.mxu0 0.0
  %574 = vmatpush1.xpose.msra.mxu0 0.0
  %575 = vmatprep.subr.mxu0 0.0
  %576 = vmatpush1.xpose.msra.mxu0 0.0
  %577 = vmatprep.subr.mxu0 0.0
  %578 = vmatpush1.xpose.msra.mxu0 0.0
  %579 = vmatprep.subr.mxu0 0.0
  %580 = vmatpush1.xpose.msra.mxu0 0.0
  %581 = vmatprep.subr.mxu0 0.0
  %582 = vmatpush1.xpose.msra.mxu0 0.0
  %583 = vmatprep.subr.mxu0 0.0
  %584 = vmatpush1.xpose.msra.mxu0 0.0
  %585 = vmatprep.subr.mxu0 0.0
  %586 = vmatpush1.xpose.msra.mxu0 0.0
  %587 = vmatprep.subr.mxu0 0.0
  %588 = vmatpush1.xpose.msra.mxu0 0.0
  %589 = vmatprep.subr.mxu0 0.0
  %590 = vmatpush1.xpose.msra.mxu0 0.0
  %591 = vmatprep.subr.mxu0 0.0
  %592 = vmatpush1.xpose.msra.mxu0 0.0
  %593 = vmatprep.subr.mxu0 0.0
  %594 = vmatpush1.xpose.msra.mxu0 0.0
  %595 = vmatprep.subr.mxu0 0.0
  %596 = vmatpush1.xpose.msra.mxu0 0.0
  %597 = vmatprep.subr.mxu0 0.0
  %598 = vmatpush1.xpose.msra.mxu0 0.0
  %599 = vmatprep.mubr.f32.mxu0 0.0
  %600 = vmatmul.mubr.f32.gmra.mrb[0].mxu0 %v533
  %v601 = vpop.f32.mrb[0].mxu0
  %v602 = vadd.f32 0.0, %v601
  %v603 = vpop.f32.mrb[0].mxu0
  %604 = vdwg.mxu0
  %606 = vset.pattern.permute.xlu0 32
  %607 = vperm.xlu0 %606, %v494
  %v608 = vpop.permute.xlu0 %607
  %611 = vset.pattern.permute.xlu0 32
  %612 = vperm.xlu0 %611, %v499
  %v613 = vpop.permute.xlu0 %612
  %616 = vset.pattern.permute.xlu0 32
  %617 = vperm.xlu0 %616, %v504
  %v618 = vpop.permute.xlu0 %617
  %621 = vset.pattern.permute.xlu0 32
  %622 = vperm.xlu0 %621, %v509
  %v623 = vpop.permute.xlu0 %622
  %626 = vset.pattern.permute.xlu0 32
  %627 = vperm.xlu0 %626, %v514
  %v628 = vpop.permute.xlu0 %627
  %631 = vset.pattern.permute.xlu0 32
  %632 = vperm.xlu0 %631, %v519
  %v633 = vpop.permute.xlu0 %632
  %636 = vset.pattern.permute.xlu0 32
  %637 = vperm.xlu0 %636, %v524
  %v638 = vpop.permute.xlu0 %637
  %641 = vset.pattern.permute.xlu0 32
  %642 = vperm.xlu0 %641, %v529
  %v643 = vpop.permute.xlu0 %642
  %v645 = vlaneseq
  %v646 = vshrl.u32 %v645, 7
  %v647 = vsub.s32 0, %v646
  %v648 = vrot.slane %v602, %v647
  %v649 = vadd.f32 %v608, %v648
  %v650 = vadd.f32 %v613, %v648
  %v651 = vadd.f32 %v618, %v648
  %v652 = vadd.f32 %v623, %v648
  %v653 = vadd.f32 %v628, %v648
  %v654 = vadd.f32 %v633, %v648
  %v655 = vadd.f32 %v638, %v648
  %v656 = vadd.f32 %v643, %v648
  %v657 = vmul.f32 %v649, 0.2
  %v658 = vmul.f32 %v650, 0.2
  %v659 = vmul.f32 %v651, 0.2
  %v660 = vmul.f32 %v652, 0.2
  %v661 = vmul.f32 %v653, 0.2
  %v662 = vmul.f32 %v654, 0.2
  %v663 = vmul.f32 %v655, 0.2
  %v664 = vmul.f32 %v656, 0.2
  %v665 = vmax.f32 %v649, %v657
  %v666 = vmax.f32 %v650, %v658
  %v667 = vmax.f32 %v651, %v659
  %v668 = vmax.f32 %v652, %v660
  %v669 = vmax.f32 %v653, %v661
  %v670 = vmax.f32 %v654, %v662
  %v671 = vmax.f32 %v655, %v663
  %v672 = vmax.f32 %v656, %v664
  %v673 = vadd.f32 %v665, %v381
  %v674 = vadd.f32 %v666, %v382
  %v675 = vadd.f32 %v667, %v383
  %v676 = vadd.f32 %v668, %v384
  %v677 = vadd.f32 %v669, %v385
  %v678 = vadd.f32 %v670, %v386
  %v679 = vadd.f32 %v671, %v387
  %v680 = vadd.f32 %v672, %v388
  %vm681 = vcmask 523264
  %v682 = vsel %vm681, %v673, -inf
  %683 = vmax.xlane.f32.xlu0 %v682
  %v684 = vpop.xlane.xlu0 %683
  %v685 = vsel %vm681, %v674, -inf
  %686 = vmax.xlane.f32.xlu0 %v685
  %v687 = vpop.xlane.xlu0 %686
  %v688 = vsel %vm681, %v675, -inf
  %689 = vmax.xlane.f32.xlu0 %v688
  %v690 = vpop.xlane.xlu0 %689
  %v691 = vsel %vm681, %v676, -inf
  %692 = vmax.xlane.f32.xlu0 %v691
  %v693 = vpop.xlane.xlu0 %692
  %v694 = vsel %vm681, %v677, -inf
  %695 = vmax.xlane.f32.xlu0 %v694
  %v696 = vpop.xlane.xlu0 %695
  %v697 = vsel %vm681, %v678, -inf
  %698 = vmax.xlane.f32.xlu0 %v697
  %v699 = vpop.xlane.xlu0 %698
  %v700 = vsel %vm681, %v679, -inf
  %701 = vmax.xlane.f32.xlu0 %v700
  %v702 = vpop.xlane.xlu0 %701
  %v703 = vsel %vm681, %v680, -inf
  %704 = vmax.xlane.f32.xlu0 %v703
  %v705 = vpop.xlane.xlu0 %704
  %v706 = vsub.f32 %v673, %v684
  %v707 = vsub.f32 %v674, %v687
  %v708 = vsub.f32 %v675, %v690
  %v709 = vsub.f32 %v676, %v693
  %v710 = vsub.f32 %v677, %v696
  %v711 = vsub.f32 %v678, %v699
  %v712 = vsub.f32 %v679, %v702
  %v713 = vsub.f32 %v680, %v705
  %v714 = vmul.f32 %v706, 1.442695
  %v715 = vpow.pop %v714
  %v716 = vmul.f32 %v707, 1.442695
  %v717 = vpow.pop %v716
  %v718 = vmul.f32 %v708, 1.442695
  %v719 = vpow.pop %v718
  %v720 = vmul.f32 %v709, 1.442695
  %v721 = vpow.pop %v720
  %v722 = vmul.f32 %v710, 1.442695
  %v723 = vpow.pop %v722
  %v724 = vmul.f32 %v711, 1.442695
  %v725 = vpow.pop %v724
  %v726 = vmul.f32 %v712, 1.442695
  %v727 = vpow.pop %v726
  %v728 = vmul.f32 %v713, 1.442695
  %v729 = vpow.pop %v728
  %v730 = vmul.f32 %v715, %v365
  %v731 = vmul.f32 %v717, %v366
  %v732 = vmul.f32 %v719, %v367
  %v733 = vmul.f32 %v721, %v368
  %v734 = vmul.f32 %v723, %v369
  %v735 = vmul.f32 %v725, %v370
  %v736 = vmul.f32 %v727, %v371
  %v737 = vmul.f32 %v729, %v372
  %v738 = vsel %vm681, %v730, 0.0
  %739 = vadd.xlane.f32.xlu0 %v738
  %v740 = vpop.xlane.xlu0 %739
  %v741 = vsel %vm681, %v731, 0.0
  %742 = vadd.xlane.f32.xlu0 %v741
  %v743 = vpop.xlane.xlu0 %742
  %v744 = vsel %vm681, %v732, 0.0
  %745 = vadd.xlane.f32.xlu0 %v744
  %v746 = vpop.xlane.xlu0 %745
  %v747 = vsel %vm681, %v733, 0.0
  %748 = vadd.xlane.f32.xlu0 %v747
  %v749 = vpop.xlane.xlu0 %748
  %v750 = vsel %vm681, %v734, 0.0
  %751 = vadd.xlane.f32.xlu0 %v750
  %v752 = vpop.xlane.xlu0 %751
  %v753 = vsel %vm681, %v735, 0.0
  %754 = vadd.xlane.f32.xlu0 %v753
  %v755 = vpop.xlane.xlu0 %754
  %v756 = vsel %vm681, %v736, 0.0
  %757 = vadd.xlane.f32.xlu0 %v756
  %v758 = vpop.xlane.xlu0 %757
  %v759 = vsel %vm681, %v737, 0.0
  %760 = vadd.xlane.f32.xlu0 %v759
  %v761 = vpop.xlane.xlu0 %760
  %v762 = vrcp.pop %v740
  %v763 = vrcp.pop %v743
  %v764 = vrcp.pop %v746
  %v765 = vrcp.pop %v749
  %v766 = vrcp.pop %v752
  %v767 = vrcp.pop %v755
  %v768 = vrcp.pop %v758
  %v769 = vrcp.pop %v761
  %v770 = vmul.f32 %v730, %v762
  %v771 = vmul.f32 %v731, %v763
  %v772 = vmul.f32 %v732, %v764
  %v773 = vmul.f32 %v733, %v765
  %v774 = vmul.f32 %v734, %v766
  %v775 = vmul.f32 %v735, %v767
  %v776 = vmul.f32 %v736, %v768
  %v777 = vmul.f32 %v737, %v769
  %v778 = vlaneseq
  %v779 = vshrl.u32 %v778, 7
  %v780 = vsub.s32 1, %v779
  %v781 = vrot.slane %v401, %v780
  %v783 = vsel %vm681, %v770, 0
  %v786 = vsel %vm681, %v771, 0
  %v789 = vsel %vm681, %v772, 0
  %v792 = vsel %vm681, %v773, 0
  %v795 = vsel %vm681, %v774, 0
  %v798 = vsel %vm681, %v775, 0
  %v801 = vsel %vm681, %v776, 0
  %v804 = vsel %vm681, %v777, 0
  %806 = vmatprep.subr.mxu0 0.0
  %807 = vmatpush1.msra.mxu0 %v494
  %808 = vmatprep.subr.mxu0 0.0
  %809 = vmatpush1.msra.mxu0 %v499
  %810 = vmatprep.subr.mxu0 0.0
  %811 = vmatpush1.msra.mxu0 %v504
  %812 = vmatprep.subr.mxu0 0.0
  %813 = vmatpush1.msra.mxu0 %v509
  %814 = vmatprep.subr.mxu0 0.0
  %815 = vmatpush1.msra.mxu0 %v514
  %816 = vmatprep.subr.mxu0 0.0
  %817 = vmatpush1.msra.mxu0 %v519
  %818 = vmatprep.subr.mxu0 0.0
  %819 = vmatpush1.msra.mxu0 %v524
  %820 = vmatprep.subr.mxu0 0.0
  %821 = vmatpush1.msra.mxu0 %v529
  %822 = vmatprep.subr.mxu0 0.0
  %823 = vmatpush1.msra.mxu0 0.0
  %824 = vmatprep.subr.mxu0 0.0
  %825 = vmatpush1.msra.mxu0 0.0
  %826 = vmatprep.subr.mxu0 0.0
  %827 = vmatpush1.msra.mxu0 0.0
  %828 = vmatprep.subr.mxu0 0.0
  %829 = vmatpush1.msra.mxu0 0.0
  %830 = vmatprep.subr.mxu0 0.0
  %831 = vmatpush1.msra.mxu0 0.0
  %832 = vmatprep.subr.mxu0 0.0
  %833 = vmatpush1.msra.mxu0 0.0
  %834 = vmatprep.subr.mxu0 0.0
  %835 = vmatpush1.msra.mxu0 0.0
  %836 = vmatprep.subr.mxu0 0.0
  %837 = vmatpush1.msra.mxu0 0.0
  %838 = vmatprep.subr.mxu0 0.0
  %839 = vmatpush1.msra.mxu0 0.0
  %840 = vmatprep.subr.mxu0 0.0
  %841 = vmatpush1.msra.mxu0 0.0
  %842 = vmatprep.subr.mxu0 0.0
  %843 = vmatpush1.msra.mxu0 0.0
  %844 = vmatprep.subr.mxu0 0.0
  %845 = vmatpush1.msra.mxu0 0.0
  %846 = vmatprep.subr.mxu0 0.0
  %847 = vmatpush1.msra.mxu0 0.0
  %848 = vmatprep.subr.mxu0 0.0
  %849 = vmatpush1.msra.mxu0 0.0
  %850 = vmatprep.subr.mxu0 0.0
  %851 = vmatpush1.msra.mxu0 0.0
  %852 = vmatprep.subr.mxu0 0.0
  %853 = vmatpush1.msra.mxu0 0.0
  %854 = vmatprep.subr.mxu0 0.0
  %855 = vmatpush1.msra.mxu0 0.0
  %856 = vmatprep.subr.mxu0 0.0
  %857 = vmatpush1.msra.mxu0 0.0
  %858 = vmatprep.subr.mxu0 0.0
  %859 = vmatpush1.msra.mxu0 0.0
  %860 = vmatprep.subr.mxu0 0.0
  %861 = vmatpush1.msra.mxu0 0.0
  %862 = vmatprep.subr.mxu0 0.0
  %863 = vmatpush1.msra.mxu0 0.0
  %864 = vmatprep.subr.mxu0 0.0
  %865 = vmatpush1.msra.mxu0 0.0
  %866 = vmatprep.subr.mxu0 0.0
  %867 = vmatpush1.msra.mxu0 0.0
  %868 = vmatprep.subr.mxu0 0.0
  %869 = vmatpush1.msra.mxu0 0.0
  %870 = vmatprep.mubr.f32.mxu0 0.0
  %871 = vmatmul.mubr.f32.gmra.mrb[0].mxu0 %v783
  %v872 = vpop.f32.mrb[0].mxu0
  %v873 = vadd.f32 %v781, %v872
  %v874 = vpop.f32.mrb[0].mxu0
  %875 = vmatprep.mubr.f32.mxu0 0.0
  %876 = vmatmul.mubr.f32.gmra.mrb[0].mxu0 %v786
  %v877 = vpop.f32.mrb[0].mxu0
  %v878 = vadd.f32 %v781, %v877
  %v879 = vpop.f32.mrb[0].mxu0
  %880 = vmatprep.mubr.f32.mxu0 0.0
  %881 = vmatmul.mubr.f32.gmra.mrb[0].mxu0 %v789
  %v882 = vpop.f32.mrb[0].mxu0
  %v883 = vadd.f32 %v781, %v882
  %v884 = vpop.f32.mrb[0].mxu0
  %885 = vmatprep.mubr.f32.mxu0 0.0
  %886 = vmatmul.mubr.f32.gmra.mrb[0].mxu0 %v792
  %v887 = vpop.f32.mrb[0].mxu0
  %v888 = vadd.f32 %v781, %v887
  %v889 = vpop.f32.mrb[0].mxu0
  %890 = vmatprep.mubr.f32.mxu0 0.0
  %891 = vmatmul.mubr.f32.gmra.mrb[0].mxu0 %v795
  %v892 = vpop.f32.mrb[0].mxu0
  %v893 = vadd.f32 %v781, %v892
  %v894 = vpop.f32.mrb[0].mxu0
  %895 = vmatprep.mubr.f32.mxu0 0.0
  %896 = vmatmul.mubr.f32.gmra.mrb[0].mxu0 %v798
  %v897 = vpop.f32.mrb[0].mxu0
  %v898 = vadd.f32 %v781, %v897
  %v899 = vpop.f32.mrb[0].mxu0
  %900 = vmatprep.mubr.f32.mxu0 0.0
  %901 = vmatmul.mubr.f32.gmra.mrb[0].mxu0 %v801
  %v902 = vpop.f32.mrb[0].mxu0
  %v903 = vadd.f32 %v781, %v902
  %v904 = vpop.f32.mrb[0].mxu0
  %905 = vmatprep.mubr.f32.mxu0 0.0
  %906 = vmatmul.mubr.f32.gmra.mrb[0].mxu0 %v804
  %v907 = vpop.f32.mrb[0].mxu0
  %v908 = vadd.f32 %v781, %v907
  %v909 = vpop.f32.mrb[0].mxu0
  %910 = vdwg.mxu0
  %vm911 = vcmp.gt.f32.partialorder %v873, 0.0
  %vm912 = vcmp.gt.f32.partialorder %v878, 0.0
  %vm913 = vcmp.gt.f32.partialorder %v883, 0.0
  %vm914 = vcmp.gt.f32.partialorder %v888, 0.0
  %vm915 = vcmp.gt.f32.partialorder %v893, 0.0
  %vm916 = vcmp.gt.f32.partialorder %v898, 0.0
  %vm917 = vcmp.gt.f32.partialorder %v903, 0.0
  %vm918 = vcmp.gt.f32.partialorder %v908, 0.0
  %v919 = vlaneseq
  %v920 = vshrl.u32 %v919, 7
  %v921 = vsub.s32 2, %v920
  %v922 = vrot.slane %v401, %v921
  %v923 = vmul.f32 %v922, %v873
  %v924 = vmul.f32 %v922, %v878
  %v925 = vmul.f32 %v922, %v883
  %v926 = vmul.f32 %v922, %v888
  %v927 = vmul.f32 %v922, %v893
  %v928 = vmul.f32 %v922, %v898
  %v929 = vmul.f32 %v922, %v903
  %v930 = vmul.f32 %v922, %v908
  %v931 = vsel %vm911, %v873, %v923
  %v932 = vsel %vm912, %v878, %v924
  %v933 = vsel %vm913, %v883, %v925
  %v934 = vsel %vm914, %v888, %v926
  %v935 = vsel %vm915, %v893, %v927
  %v936 = vsel %vm916, %v898, %v928
  %v937 = vsel %vm917, %v903, %v929
  %v938 = vsel %vm918, %v908, %v930
  %s939 = scalar_lea.vmem %s3, 32
  %v940 = vld [vmem:[%s939] sm:$0xff]
  %v941 = vld [vmem:[%s939 + $0x8] sm:$0xff]
  %v942 = vld [vmem:[%s939 + $0x10] sm:$0xff]
  %v943 = vld [vmem:[%s939 + $0x18] sm:$0xff]
  %s944 = scalar_lea.vmem %s4, 4
  %v945 = vld [vmem:[%s944] sm:$0x7]
  %v947 = vsel %vm402, %v931, 0
  %v950 = vsel %vm402, %v932, 0
  %v953 = vsel %vm402, %v933, 0
  %v956 = vsel %vm402, %v934, 0
  %v959 = vsel %vm402, %v935, 0
  %v962 = vsel %vm402, %v936, 0
  %v965 = vsel %vm402, %v937, 0
  %v968 = vsel %vm402, %v938, 0
  %970 = vmatprep.subr.mxu0 0.0
  %971 = vmatpush1.msra.mxu0 %v940
  %972 = vmatprep.subr.mxu0 0.0
  %973 = vmatpush1.msra.mxu0 %v941
  %974 = vmatprep.subr.mxu0 0.0
  %975 = vmatpush1.msra.mxu0 %v942
  %976 = vmatprep.subr.mxu0 0.0
  %977 = vmatpush1.msra.mxu0 %v943
  %978 = vmatprep.subr.mxu0 0.0
  %979 = vmatpush1.msra.mxu0 0.0
  %980 = vmatprep.subr.mxu0 0.0
  %981 = vmatpush1.msra.mxu0 0.0
  %982 = vmatprep.subr.mxu0 0.0
  %983 = vmatpush1.msra.mxu0 0.0
  %984 = vmatprep.subr.mxu0 0.0
  %985 = vmatpush1.msra.mxu0 0.0
  %986 = vmatprep.subr.mxu0 0.0
  %987 = vmatpush1.msra.mxu0 0.0
  %988 = vmatprep.subr.mxu0 0.0
  %989 = vmatpush1.msra.mxu0 0.0
  %990 = vmatprep.subr.mxu0 0.0
  %991 = vmatpush1.msra.mxu0 0.0
  %992 = vmatprep.subr.mxu0 0.0
  %993 = vmatpush1.msra.mxu0 0.0
  %994 = vmatprep.subr.mxu0 0.0
  %995 = vmatpush1.msra.mxu0 0.0
  %996 = vmatprep.subr.mxu0 0.0
  %997 = vmatpush1.msra.mxu0 0.0
  %998 = vmatprep.subr.mxu0 0.0
  %999 = vmatpush1.msra.mxu0 0.0
  %1000 = vmatprep.subr.mxu0 0.0
  %1001 = vmatpush1.msra.mxu0 0.0
  %1002 = vmatprep.subr.mxu0 0.0
  %1003 = vmatpush1.msra.mxu0 0.0
  %1004 = vmatprep.subr.mxu0 0.0
  %1005 = vmatpush1.msra.mxu0 0.0
  %1006 = vmatprep.subr.mxu0 0.0
  %1007 = vmatpush1.msra.mxu0 0.0
  %1008 = vmatprep.subr.mxu0 0.0
  %1009 = vmatpush1.msra.mxu0 0.0
  %1010 = vmatprep.subr.mxu0 0.0
  %1011 = vmatpush1.msra.mxu0 0.0
  %1012 = vmatprep.subr.mxu0 0.0
  %1013 = vmatpush1.msra.mxu0 0.0
  %1014 = vmatprep.subr.mxu0 0.0
  %1015 = vmatpush1.msra.mxu0 0.0
  %1016 = vmatprep.subr.mxu0 0.0
  %1017 = vmatpush1.msra.mxu0 0.0
  %1018 = vmatprep.subr.mxu0 0.0
  %1019 = vmatpush1.msra.mxu0 0.0
  %1020 = vmatprep.subr.mxu0 0.0
  %1021 = vmatpush1.msra.mxu0 0.0
  %1022 = vmatprep.subr.mxu0 0.0
  %1023 = vmatpush1.msra.mxu0 0.0
  %1024 = vmatprep.subr.mxu0 0.0
  %1025 = vmatpush1.msra.mxu0 0.0
  %1026 = vmatprep.subr.mxu0 0.0
  %1027 = vmatpush1.msra.mxu0 0.0
  %1028 = vmatprep.subr.mxu0 0.0
  %1029 = vmatpush1.msra.mxu0 0.0
  %1030 = vmatprep.subr.mxu0 0.0
  %1031 = vmatpush1.msra.mxu0 0.0
  %1032 = vmatprep.subr.mxu0 0.0
  %1033 = vmatpush1.msra.mxu0 0.0
  %1034 = vmatprep.mubr.f32.mxu0 0.0
  %1035 = vmatmul.mubr.f32.gmra.mrb[0].mxu0 %v947
  %v1036 = vpop.f32.mrb[0].mxu0
  %v1037 = vadd.f32 0.0, %v1036
  %v1038 = vpop.f32.mrb[0].mxu0
  %1039 = vmatprep.mubr.f32.mxu0 0.0
  %1040 = vmatmul.mubr.f32.gmra.mrb[0].mxu0 %v950
  %v1041 = vpop.f32.mrb[0].mxu0
  %v1042 = vadd.f32 0.0, %v1041
  %v1043 = vpop.f32.mrb[0].mxu0
  %1044 = vmatprep.mubr.f32.mxu0 0.0
  %1045 = vmatmul.mubr.f32.gmra.mrb[0].mxu0 %v953
  %v1046 = vpop.f32.mrb[0].mxu0
  %v1047 = vadd.f32 0.0, %v1046
  %v1048 = vpop.f32.mrb[0].mxu0
  %1049 = vmatprep.mubr.f32.mxu0 0.0
  %1050 = vmatmul.mubr.f32.gmra.mrb[0].mxu0 %v956
  %v1051 = vpop.f32.mrb[0].mxu0
  %v1052 = vadd.f32 0.0, %v1051
  %v1053 = vpop.f32.mrb[0].mxu0
  %1054 = vmatprep.mubr.f32.mxu0 0.0
  %1055 = vmatmul.mubr.f32.gmra.mrb[0].mxu0 %v959
  %v1056 = vpop.f32.mrb[0].mxu0
  %v1057 = vadd.f32 0.0, %v1056
  %v1058 = vpop.f32.mrb[0].mxu0
  %1059 = vmatprep.mubr.f32.mxu0 0.0
  %1060 = vmatmul.mubr.f32.gmra.mrb[0].mxu0 %v962
  %v1061 = vpop.f32.mrb[0].mxu0
  %v1062 = vadd.f32 0.0, %v1061
  %v1063 = vpop.f32.mrb[0].mxu0
  %1064 = vmatprep.mubr.f32.mxu0 0.0
  %1065 = vmatmul.mubr.f32.gmra.mrb[0].mxu0 %v965
  %v1066 = vpop.f32.mrb[0].mxu0
  %v1067 = vadd.f32 0.0, %v1066
  %v1068 = vpop.f32.mrb[0].mxu0
  %1069 = vmatprep.mubr.f32.mxu0 0.0
  %1070 = vmatmul.mubr.f32.gmra.mrb[0].mxu0 %v968
  %v1071 = vpop.f32.mrb[0].mxu0
  %v1072 = vadd.f32 0.0, %v1071
  %v1073 = vpop.f32.mrb[0].mxu0
  %1074 = vdwg.mxu0
  %v1076 = vsel %vm402, %v945, 0
  %1078 = vmatprep.subr.mxu0 0.0
  %1079 = vmatpush1.xpose.msra.mxu0 %v947
  %1080 = vmatprep.subr.mxu0 0.0
  %1081 = vmatpush1.xpose.msra.mxu0 %v950
  %1082 = vmatprep.subr.mxu0 0.0
  %1083 = vmatpush1.xpose.msra.mxu0 %v953
  %1084 = vmatprep.subr.mxu0 0.0
  %1085 = vmatpush1.xpose.msra.mxu0 %v956
  %1086 = vmatprep.subr.mxu0 0.0
  %1087 = vmatpush1.xpose.msra.mxu0 %v959
  %1088 = vmatprep.subr.mxu0 0.0
  %1089 = vmatpush1.xpose.msra.mxu0 %v962
  %1090 = vmatprep.subr.mxu0 0.0
  %1091 = vmatpush1.xpose.msra.mxu0 %v965
  %1092 = vmatprep.subr.mxu0 0.0
  %1093 = vmatpush1.xpose.msra.mxu0 %v968
  %1094 = vmatprep.subr.mxu0 0.0
  %1095 = vmatpush1.xpose.msra.mxu0 0.0
  %1096 = vmatprep.subr.mxu0 0.0
  %1097 = vmatpush1.xpose.msra.mxu0 0.0
  %1098 = vmatprep.subr.mxu0 0.0
  %1099 = vmatpush1.xpose.msra.mxu0 0.0
  %1100 = vmatprep.subr.mxu0 0.0
  %1101 = vmatpush1.xpose.msra.mxu0 0.0
  %1102 = vmatprep.subr.mxu0 0.0
  %1103 = vmatpush1.xpose.msra.mxu0 0.0
  %1104 = vmatprep.subr.mxu0 0.0
  %1105 = vmatpush1.xpose.msra.mxu0 0.0
  %1106 = vmatprep.subr.mxu0 0.0
  %1107 = vmatpush1.xpose.msra.mxu0 0.0
  %1108 = vmatprep.subr.mxu0 0.0
  %1109 = vmatpush1.xpose.msra.mxu0 0.0
  %1110 = vmatprep.subr.mxu0 0.0
  %1111 = vmatpush1.xpose.msra.mxu0 0.0
  %1112 = vmatprep.subr.mxu0 0.0
  %1113 = vmatpush1.xpose.msra.mxu0 0.0
  %1114 = vmatprep.subr.mxu0 0.0
  %1115 = vmatpush1.xpose.msra.mxu0 0.0
  %1116 = vmatprep.subr.mxu0 0.0
  %1117 = vmatpush1.xpose.msra.mxu0 0.0
  %1118 = vmatprep.subr.mxu0 0.0
  %1119 = vmatpush1.xpose.msra.mxu0 0.0
  %1120 = vmatprep.subr.mxu0 0.0
  %1121 = vmatpush1.xpose.msra.mxu0 0.0
  %1122 = vmatprep.subr.mxu0 0.0
  %1123 = vmatpush1.xpose.msra.mxu0 0.0
  %1124 = vmatprep.subr.mxu0 0.0
  %1125 = vmatpush1.xpose.msra.mxu0 0.0
  %1126 = vmatprep.subr.mxu0 0.0
  %1127 = vmatpush1.xpose.msra.mxu0 0.0
  %1128 = vmatprep.subr.mxu0 0.0
  %1129 = vmatpush1.xpose.msra.mxu0 0.0
  %1130 = vmatprep.subr.mxu0 0.0
  %1131 = vmatpush1.xpose.msra.mxu0 0.0
  %1132 = vmatprep.subr.mxu0 0.0
  %1133 = vmatpush1.xpose.msra.mxu0 0.0
  %1134 = vmatprep.subr.mxu0 0.0
  %1135 = vmatpush1.xpose.msra.mxu0 0.0
  %1136 = vmatprep.subr.mxu0 0.0
  %1137 = vmatpush1.xpose.msra.mxu0 0.0
  %1138 = vmatprep.subr.mxu0 0.0
  %1139 = vmatpush1.xpose.msra.mxu0 0.0
  %1140 = vmatprep.subr.mxu0 0.0
  %1141 = vmatpush1.xpose.msra.mxu0 0.0
  %1142 = vmatprep.mubr.f32.mxu0 0.0
  %1143 = vmatmul.mubr.f32.gmra.mrb[0].mxu0 %v1076
  %v1144 = vpop.f32.mrb[0].mxu0
  %v1145 = vadd.f32 0.0, %v1144
  %v1146 = vpop.f32.mrb[0].mxu0
  %1147 = vdwg.mxu0
  %1149 = vset.pattern.permute.xlu0 32
  %1150 = vperm.xlu0 %1149, %v1037
  %v1151 = vpop.permute.xlu0 %1150
  %1154 = vset.pattern.permute.xlu0 32
  %1155 = vperm.xlu0 %1154, %v1042
  %v1156 = vpop.permute.xlu0 %1155
  %1159 = vset.pattern.permute.xlu0 32
  %1160 = vperm.xlu0 %1159, %v1047
  %v1161 = vpop.permute.xlu0 %1160
  %1164 = vset.pattern.permute.xlu0 32
  %1165 = vperm.xlu0 %1164, %v1052
  %v1166 = vpop.permute.xlu0 %1165
  %1169 = vset.pattern.permute.xlu0 32
  %1170 = vperm.xlu0 %1169, %v1057
  %v1171 = vpop.permute.xlu0 %1170
  %1174 = vset.pattern.permute.xlu0 32
  %1175 = vperm.xlu0 %1174, %v1062
  %v1176 = vpop.permute.xlu0 %1175
  %1179 = vset.pattern.permute.xlu0 32
  %1180 = vperm.xlu0 %1179, %v1067
  %v1181 = vpop.permute.xlu0 %1180
  %1184 = vset.pattern.permute.xlu0 32
  %1185 = vperm.xlu0 %1184, %v1072
  %v1186 = vpop.permute.xlu0 %1185
  %v1188 = vlaneseq
  %v1189 = vshrl.u32 %v1188, 7
  %v1190 = vsub.s32 0, %v1189
  %v1191 = vrot.slane %v1145, %v1190
  %v1192 = vadd.f32 %v1151, %v1191
  %v1193 = vadd.f32 %v1156, %v1191
  %v1194 = vadd.f32 %v1161, %v1191
  %v1195 = vadd.f32 %v1166, %v1191
  %v1196 = vadd.f32 %v1171, %v1191
  %v1197 = vadd.f32 %v1176, %v1191
  %v1198 = vadd.f32 %v1181, %v1191
  %v1199 = vadd.f32 %v1186, %v1191
  %v1200 = vmul.f32 %v1192, 0.2
  %v1201 = vmul.f32 %v1193, 0.2
  %v1202 = vmul.f32 %v1194, 0.2
  %v1203 = vmul.f32 %v1195, 0.2
  %v1204 = vmul.f32 %v1196, 0.2
  %v1205 = vmul.f32 %v1197, 0.2
  %v1206 = vmul.f32 %v1198, 0.2
  %v1207 = vmul.f32 %v1199, 0.2
  %v1208 = vmax.f32 %v1192, %v1200
  %v1209 = vmax.f32 %v1193, %v1201
  %v1210 = vmax.f32 %v1194, %v1202
  %v1211 = vmax.f32 %v1195, %v1203
  %v1212 = vmax.f32 %v1196, %v1204
  %v1213 = vmax.f32 %v1197, %v1205
  %v1214 = vmax.f32 %v1198, %v1206
  %v1215 = vmax.f32 %v1199, %v1207
  %v1216 = vadd.f32 %v1208, %v381
  %v1217 = vadd.f32 %v1209, %v382
  %v1218 = vadd.f32 %v1210, %v383
  %v1219 = vadd.f32 %v1211, %v384
  %v1220 = vadd.f32 %v1212, %v385
  %v1221 = vadd.f32 %v1213, %v386
  %v1222 = vadd.f32 %v1214, %v387
  %v1223 = vadd.f32 %v1215, %v388
  %v1224 = vsel %vm681, %v1216, -inf
  %1225 = vmax.xlane.f32.xlu0 %v1224
  %v1226 = vpop.xlane.xlu0 %1225
  %v1227 = vsel %vm681, %v1217, -inf
  %1228 = vmax.xlane.f32.xlu0 %v1227
  %v1229 = vpop.xlane.xlu0 %1228
  %v1230 = vsel %vm681, %v1218, -inf
  %1231 = vmax.xlane.f32.xlu0 %v1230
  %v1232 = vpop.xlane.xlu0 %1231
  %v1233 = vsel %vm681, %v1219, -inf
  %1234 = vmax.xlane.f32.xlu0 %v1233
  %v1235 = vpop.xlane.xlu0 %1234
  %v1236 = vsel %vm681, %v1220, -inf
  %1237 = vmax.xlane.f32.xlu0 %v1236
  %v1238 = vpop.xlane.xlu0 %1237
  %v1239 = vsel %vm681, %v1221, -inf
  %1240 = vmax.xlane.f32.xlu0 %v1239
  %v1241 = vpop.xlane.xlu0 %1240
  %v1242 = vsel %vm681, %v1222, -inf
  %1243 = vmax.xlane.f32.xlu0 %v1242
  %v1244 = vpop.xlane.xlu0 %1243
  %v1245 = vsel %vm681, %v1223, -inf
  %1246 = vmax.xlane.f32.xlu0 %v1245
  %v1247 = vpop.xlane.xlu0 %1246
  %v1248 = vsub.f32 %v1216, %v1226
  %v1249 = vsub.f32 %v1217, %v1229
  %v1250 = vsub.f32 %v1218, %v1232
  %v1251 = vsub.f32 %v1219, %v1235
  %v1252 = vsub.f32 %v1220, %v1238
  %v1253 = vsub.f32 %v1221, %v1241
  %v1254 = vsub.f32 %v1222, %v1244
  %v1255 = vsub.f32 %v1223, %v1247
  %v1256 = vmul.f32 %v1248, 1.442695
  %v1257 = vpow.pop %v1256
  %v1258 = vmul.f32 %v1249, 1.442695
  %v1259 = vpow.pop %v1258
  %v1260 = vmul.f32 %v1250, 1.442695
  %v1261 = vpow.pop %v1260
  %v1262 = vmul.f32 %v1251, 1.442695
  %v1263 = vpow.pop %v1262
  %v1264 = vmul.f32 %v1252, 1.442695
  %v1265 = vpow.pop %v1264
  %v1266 = vmul.f32 %v1253, 1.442695
  %v1267 = vpow.pop %v1266
  %v1268 = vmul.f32 %v1254, 1.442695
  %v1269 = vpow.pop %v1268
  %v1270 = vmul.f32 %v1255, 1.442695
  %v1271 = vpow.pop %v1270
  %v1272 = vmul.f32 %v1257, %v365
  %v1273 = vmul.f32 %v1259, %v366
  %v1274 = vmul.f32 %v1261, %v367
  %v1275 = vmul.f32 %v1263, %v368
  %v1276 = vmul.f32 %v1265, %v369
  %v1277 = vmul.f32 %v1267, %v370
  %v1278 = vmul.f32 %v1269, %v371
  %v1279 = vmul.f32 %v1271, %v372
  %v1280 = vsel %vm681, %v1272, 0.0
  %1281 = vadd.xlane.f32.xlu0 %v1280
  %v1282 = vpop.xlane.xlu0 %1281
  %v1283 = vsel %vm681, %v1273, 0.0
  %1284 = vadd.xlane.f32.xlu0 %v1283
  %v1285 = vpop.xlane.xlu0 %1284
  %v1286 = vsel %vm681, %v1274, 0.0
  %1287 = vadd.xlane.f32.xlu0 %v1286
  %v1288 = vpop.xlane.xlu0 %1287
  %v1289 = vsel %vm681, %v1275, 0.0
  %1290 = vadd.xlane.f32.xlu0 %v1289
  %v1291 = vpop.xlane.xlu0 %1290
  %v1292 = vsel %vm681, %v1276, 0.0
  %1293 = vadd.xlane.f32.xlu0 %v1292
  %v1294 = vpop.xlane.xlu0 %1293
  %v1295 = vsel %vm681, %v1277, 0.0
  %1296 = vadd.xlane.f32.xlu0 %v1295
  %v1297 = vpop.xlane.xlu0 %1296
  %v1298 = vsel %vm681, %v1278, 0.0
  %1299 = vadd.xlane.f32.xlu0 %v1298
  %v1300 = vpop.xlane.xlu0 %1299
  %v1301 = vsel %vm681, %v1279, 0.0
  %1302 = vadd.xlane.f32.xlu0 %v1301
  %v1303 = vpop.xlane.xlu0 %1302
  %v1304 = vrcp.pop %v1282
  %v1305 = vrcp.pop %v1285
  %v1306 = vrcp.pop %v1288
  %v1307 = vrcp.pop %v1291
  %v1308 = vrcp.pop %v1294
  %v1309 = vrcp.pop %v1297
  %v1310 = vrcp.pop %v1300
  %v1311 = vrcp.pop %v1303
  %v1312 = vmul.f32 %v1272, %v1304
  %v1313 = vmul.f32 %v1273, %v1305
  %v1314 = vmul.f32 %v1274, %v1306
  %v1315 = vmul.f32 %v1275, %v1307
  %v1316 = vmul.f32 %v1276, %v1308
  %v1317 = vmul.f32 %v1277, %v1309
  %v1318 = vmul.f32 %v1278, %v1310
  %v1319 = vmul.f32 %v1279, %v1311
  %v1320 = vlaneseq
  %v1321 = vshrl.u32 %v1320, 7
  %v1322 = vsub.s32 1, %v1321
  %v1323 = vrot.slane %v945, %v1322
  %v1325 = vsel %vm681, %v1312, 0
  %v1328 = vsel %vm681, %v1313, 0
  %v1331 = vsel %vm681, %v1314, 0
  %v1334 = vsel %vm681, %v1315, 0
  %v1337 = vsel %vm681, %v1316, 0
  %v1340 = vsel %vm681, %v1317, 0
  %v1343 = vsel %vm681, %v1318, 0
  %v1346 = vsel %vm681, %v1319, 0
  %1348 = vmatprep.subr.mxu0 0.0
  %1349 = vmatpush1.msra.mxu0 %v1037
  %1350 = vmatprep.subr.mxu0 0.0
  %1351 = vmatpush1.msra.mxu0 %v1042
  %1352 = vmatprep.subr.mxu0 0.0
  %1353 = vmatpush1.msra.mxu0 %v1047
  %1354 = vmatprep.subr.mxu0 0.0
  %1355 = vmatpush1.msra.mxu0 %v1052
  %1356 = vmatprep.subr.mxu0 0.0
  %1357 = vmatpush1.msra.mxu0 %v1057
  %1358 = vmatprep.subr.mxu0 0.0
  %1359 = vmatpush1.msra.mxu0 %v1062
  %1360 = vmatprep.subr.mxu0 0.0
  %1361 = vmatpush1.msra.mxu0 %v1067
  %1362 = vmatprep.subr.mxu0 0.0
  %1363 = vmatpush1.msra.mxu0 %v1072
  %1364 = vmatprep.subr.mxu0 0.0
  %1365 = vmatpush1.msra.mxu0 0.0
  %1366 = vmatprep.subr.mxu0 0.0
  %1367 = vmatpush1.msra.mxu0 0.0
  %1368 = vmatprep.subr.mxu0 0.0
  %1369 = vmatpush1.msra.mxu0 0.0
  %1370 = vmatprep.subr.mxu0 0.0
  %1371 = vmatpush1.msra.mxu0 0.0
  %1372 = vmatprep.subr.mxu0 0.0
  %1373 = vmatpush1.msra.mxu0 0.0
  %1374 = vmatprep.subr.mxu0 0.0
  %1375 = vmatpush1.msra.mxu0 0.0
  %1376 = vmatprep.subr.mxu0 0.0
  %1377 = vmatpush1.msra.mxu0 0.0
  %1378 = vmatprep.subr.mxu0 0.0
  %1379 = vmatpush1.msra.mxu0 0.0
  %1380 = vmatprep.subr.mxu0 0.0
  %1381 = vmatpush1.msra.mxu0 0.0
  %1382 = vmatprep.subr.mxu0 0.0
  %1383 = vmatpush1.msra.mxu0 0.0
  %1384 = vmatprep.subr.mxu0 0.0
  %1385 = vmatpush1.msra.mxu0 0.0
  %1386 = vmatprep.subr.mxu0 0.0
  %1387 = vmatpush1.msra.mxu0 0.0
  %1388 = vmatprep.subr.mxu0 0.0
  %1389 = vmatpush1.msra.mxu0 0.0
  %1390 = vmatprep.subr.mxu0 0.0
  %1391 = vmatpush1.msra.mxu0 0.0
  %1392 = vmatprep.subr.mxu0 0.0
  %1393 = vmatpush1.msra.mxu0 0.0
  %1394 = vmatprep.subr.mxu0 0.0
  %1395 = vmatpush1.msra.mxu0 0.0
  %1396 = vmatprep.subr.mxu0 0.0
  %1397 = vmatpush1.msra.mxu0 0.0
  %1398 = vmatprep.subr.mxu0 0.0
  %1399 = vmatpush1.msra.mxu0 0.0
  %1400 = vmatprep.subr.mxu0 0.0
  %1401 = vmatpush1.msra.mxu0 0.0
  %1402 = vmatprep.subr.mxu0 0.0
  %1403 = vmatpush1.msra.mxu0 0.0
  %1404 = vmatprep.subr.mxu0 0.0
  %1405 = vmatpush1.msra.mxu0 0.0
  %1406 = vmatprep.subr.mxu0 0.0
  %1407 = vmatpush1.msra.mxu0 0.0
  %1408 = vmatprep.subr.mxu0 0.0
  %1409 = vmatpush1.msra.mxu0 0.0
  %1410 = vmatprep.subr.mxu0 0.0
  %1411 = vmatpush1.msra.mxu0 0.0
  %1412 = vmatprep.mubr.f32.mxu0 0.0
  %1413 = vmatmul.mubr.f32.gmra.mrb[0].mxu0 %v1325
  %v1414 = vpop.f32.mrb[0].mxu0
  %v1415 = vadd.f32 %v1323, %v1414
  %v1416 = vpop.f32.mrb[0].mxu0
  %1417 = vmatprep.mubr.f32.mxu0 0.0
  %1418 = vmatmul.mubr.f32.gmra.mrb[0].mxu0 %v1328
  %v1419 = vpop.f32.mrb[0].mxu0
  %v1420 = vadd.f32 %v1323, %v1419
  %v1421 = vpop.f32.mrb[0].mxu0
  %1422 = vmatprep.mubr.f32.mxu0 0.0
  %1423 = vmatmul.mubr.f32.gmra.mrb[0].mxu0 %v1331
  %v1424 = vpop.f32.mrb[0].mxu0
  %v1425 = vadd.f32 %v1323, %v1424
  %v1426 = vpop.f32.mrb[0].mxu0
  %1427 = vmatprep.mubr.f32.mxu0 0.0
  %1428 = vmatmul.mubr.f32.gmra.mrb[0].mxu0 %v1334
  %v1429 = vpop.f32.mrb[0].mxu0
  %v1430 = vadd.f32 %v1323, %v1429
  %v1431 = vpop.f32.mrb[0].mxu0
  %1432 = vmatprep.mubr.f32.mxu0 0.0
  %1433 = vmatmul.mubr.f32.gmra.mrb[0].mxu0 %v1337
  %v1434 = vpop.f32.mrb[0].mxu0
  %v1435 = vadd.f32 %v1323, %v1434
  %v1436 = vpop.f32.mrb[0].mxu0
  %1437 = vmatprep.mubr.f32.mxu0 0.0
  %1438 = vmatmul.mubr.f32.gmra.mrb[0].mxu0 %v1340
  %v1439 = vpop.f32.mrb[0].mxu0
  %v1440 = vadd.f32 %v1323, %v1439
  %v1441 = vpop.f32.mrb[0].mxu0
  %1442 = vmatprep.mubr.f32.mxu0 0.0
  %1443 = vmatmul.mubr.f32.gmra.mrb[0].mxu0 %v1343
  %v1444 = vpop.f32.mrb[0].mxu0
  %v1445 = vadd.f32 %v1323, %v1444
  %v1446 = vpop.f32.mrb[0].mxu0
  %1447 = vmatprep.mubr.f32.mxu0 0.0
  %1448 = vmatmul.mubr.f32.gmra.mrb[0].mxu0 %v1346
  %v1449 = vpop.f32.mrb[0].mxu0
  %v1450 = vadd.f32 %v1323, %v1449
  %v1451 = vpop.f32.mrb[0].mxu0
  %1452 = vdwg.mxu0
  %vm1453 = vcmp.gt.f32.partialorder %v1415, 0.0
  %vm1454 = vcmp.gt.f32.partialorder %v1420, 0.0
  %vm1455 = vcmp.gt.f32.partialorder %v1425, 0.0
  %vm1456 = vcmp.gt.f32.partialorder %v1430, 0.0
  %vm1457 = vcmp.gt.f32.partialorder %v1435, 0.0
  %vm1458 = vcmp.gt.f32.partialorder %v1440, 0.0
  %vm1459 = vcmp.gt.f32.partialorder %v1445, 0.0
  %vm1460 = vcmp.gt.f32.partialorder %v1450, 0.0
  %v1461 = vlaneseq
  %v1462 = vshrl.u32 %v1461, 7
  %v1463 = vsub.s32 2, %v1462
  %v1464 = vrot.slane %v945, %v1463
  %v1465 = vmul.f32 %v1464, %v1415
  %v1466 = vmul.f32 %v1464, %v1420
  %v1467 = vmul.f32 %v1464, %v1425
  %v1468 = vmul.f32 %v1464, %v1430
  %v1469 = vmul.f32 %v1464, %v1435
  %v1470 = vmul.f32 %v1464, %v1440
  %v1471 = vmul.f32 %v1464, %v1445
  %v1472 = vmul.f32 %v1464, %v1450
  %v1473 = vsel %vm1453, %v1415, %v1465
  %v1474 = vsel %vm1454, %v1420, %v1466
  %v1475 = vsel %vm1455, %v1425, %v1467
  %v1476 = vsel %vm1456, %v1430, %v1468
  %v1477 = vsel %vm1457, %v1435, %v1469
  %v1478 = vsel %vm1458, %v1440, %v1470
  %v1479 = vsel %vm1459, %v1445, %v1471
  %v1480 = vsel %vm1460, %v1450, %v1472
  %s1481 = scalar_lea.vmem %s3, 64
  %v1482 = vld [vmem:[%s1481] sm:$0xff]
  %v1483 = vld [vmem:[%s1481 + $0x8] sm:$0xff]
  %v1484 = vld [vmem:[%s1481 + $0x10] sm:$0xff]
  %v1485 = vld [vmem:[%s1481 + $0x18] sm:$0xff]
  %s1486 = scalar_lea.vmem %s4, 8
  %v1487 = vld [vmem:[%s1486] sm:$0x7]
  %v1489 = vsel %vm402, %v1473, 0
  %v1492 = vsel %vm402, %v1474, 0
  %v1495 = vsel %vm402, %v1475, 0
  %v1498 = vsel %vm402, %v1476, 0
  %v1501 = vsel %vm402, %v1477, 0
  %v1504 = vsel %vm402, %v1478, 0
  %v1507 = vsel %vm402, %v1479, 0
  %v1510 = vsel %vm402, %v1480, 0
  %1512 = vmatprep.subr.mxu0 0.0
  %1513 = vmatpush1.msra.mxu0 %v1482
  %1514 = vmatprep.subr.mxu0 0.0
  %1515 = vmatpush1.msra.mxu0 %v1483
  %1516 = vmatprep.subr.mxu0 0.0
  %1517 = vmatpush1.msra.mxu0 %v1484
  %1518 = vmatprep.subr.mxu0 0.0
  %1519 = vmatpush1.msra.mxu0 %v1485
  %1520 = vmatprep.subr.mxu0 0.0
  %1521 = vmatpush1.msra.mxu0 0.0
  %1522 = vmatprep.subr.mxu0 0.0
  %1523 = vmatpush1.msra.mxu0 0.0
  %1524 = vmatprep.subr.mxu0 0.0
  %1525 = vmatpush1.msra.mxu0 0.0
  %1526 = vmatprep.subr.mxu0 0.0
  %1527 = vmatpush1.msra.mxu0 0.0
  %1528 = vmatprep.subr.mxu0 0.0
  %1529 = vmatpush1.msra.mxu0 0.0
  %1530 = vmatprep.subr.mxu0 0.0
  %1531 = vmatpush1.msra.mxu0 0.0
  %1532 = vmatprep.subr.mxu0 0.0
  %1533 = vmatpush1.msra.mxu0 0.0
  %1534 = vmatprep.subr.mxu0 0.0
  %1535 = vmatpush1.msra.mxu0 0.0
  %1536 = vmatprep.subr.mxu0 0.0
  %1537 = vmatpush1.msra.mxu0 0.0
  %1538 = vmatprep.subr.mxu0 0.0
  %1539 = vmatpush1.msra.mxu0 0.0
  %1540 = vmatprep.subr.mxu0 0.0
  %1541 = vmatpush1.msra.mxu0 0.0
  %1542 = vmatprep.subr.mxu0 0.0
  %1543 = vmatpush1.msra.mxu0 0.0
  %1544 = vmatprep.subr.mxu0 0.0
  %1545 = vmatpush1.msra.mxu0 0.0
  %1546 = vmatprep.subr.mxu0 0.0
  %1547 = vmatpush1.msra.mxu0 0.0
  %1548 = vmatprep.subr.mxu0 0.0
  %1549 = vmatpush1.msra.mxu0 0.0
  %1550 = vmatprep.subr.mxu0 0.0
  %1551 = vmatpush1.msra.mxu0 0.0
  %1552 = vmatprep.subr.mxu0 0.0
  %1553 = vmatpush1.msra.mxu0 0.0
  %1554 = vmatprep.subr.mxu0 0.0
  %1555 = vmatpush1.msra.mxu0 0.0
  %1556 = vmatprep.subr.mxu0 0.0
  %1557 = vmatpush1.msra.mxu0 0.0
  %1558 = vmatprep.subr.mxu0 0.0
  %1559 = vmatpush1.msra.mxu0 0.0
  %1560 = vmatprep.subr.mxu0 0.0
  %1561 = vmatpush1.msra.mxu0 0.0
  %1562 = vmatprep.subr.mxu0 0.0
  %1563 = vmatpush1.msra.mxu0 0.0
  %1564 = vmatprep.subr.mxu0 0.0
  %1565 = vmatpush1.msra.mxu0 0.0
  %1566 = vmatprep.subr.mxu0 0.0
  %1567 = vmatpush1.msra.mxu0 0.0
  %1568 = vmatprep.subr.mxu0 0.0
  %1569 = vmatpush1.msra.mxu0 0.0
  %1570 = vmatprep.subr.mxu0 0.0
  %1571 = vmatpush1.msra.mxu0 0.0
  %1572 = vmatprep.subr.mxu0 0.0
  %1573 = vmatpush1.msra.mxu0 0.0
  %1574 = vmatprep.subr.mxu0 0.0
  %1575 = vmatpush1.msra.mxu0 0.0
  %1576 = vmatprep.mubr.f32.mxu0 0.0
  %1577 = vmatmul.mubr.f32.gmra.mrb[0].mxu0 %v1489
  %v1578 = vpop.f32.mrb[0].mxu0
  %v1579 = vadd.f32 0.0, %v1578
  %v1580 = vpop.f32.mrb[0].mxu0
  %1581 = vmatprep.mubr.f32.mxu0 0.0
  %1582 = vmatmul.mubr.f32.gmra.mrb[0].mxu0 %v1492
  %v1583 = vpop.f32.mrb[0].mxu0
  %v1584 = vadd.f32 0.0, %v1583
  %v1585 = vpop.f32.mrb[0].mxu0
  %1586 = vmatprep.mubr.f32.mxu0 0.0
  %1587 = vmatmul.mubr.f32.gmra.mrb[0].mxu0 %v1495
  %v1588 = vpop.f32.mrb[0].mxu0
  %v1589 = vadd.f32 0.0, %v1588
  %v1590 = vpop.f32.mrb[0].mxu0
  %1591 = vmatprep.mubr.f32.mxu0 0.0
  %1592 = vmatmul.mubr.f32.gmra.mrb[0].mxu0 %v1498
  %v1593 = vpop.f32.mrb[0].mxu0
  %v1594 = vadd.f32 0.0, %v1593
  %v1595 = vpop.f32.mrb[0].mxu0
  %1596 = vmatprep.mubr.f32.mxu0 0.0
  %1597 = vmatmul.mubr.f32.gmra.mrb[0].mxu0 %v1501
  %v1598 = vpop.f32.mrb[0].mxu0
  %v1599 = vadd.f32 0.0, %v1598
  %v1600 = vpop.f32.mrb[0].mxu0
  %1601 = vmatprep.mubr.f32.mxu0 0.0
  %1602 = vmatmul.mubr.f32.gmra.mrb[0].mxu0 %v1504
  %v1603 = vpop.f32.mrb[0].mxu0
  %v1604 = vadd.f32 0.0, %v1603
  %v1605 = vpop.f32.mrb[0].mxu0
  %1606 = vmatprep.mubr.f32.mxu0 0.0
  %1607 = vmatmul.mubr.f32.gmra.mrb[0].mxu0 %v1507
  %v1608 = vpop.f32.mrb[0].mxu0
  %v1609 = vadd.f32 0.0, %v1608
  %v1610 = vpop.f32.mrb[0].mxu0
  %1611 = vmatprep.mubr.f32.mxu0 0.0
  %1612 = vmatmul.mubr.f32.gmra.mrb[0].mxu0 %v1510
  %v1613 = vpop.f32.mrb[0].mxu0
  %v1614 = vadd.f32 0.0, %v1613
  %v1615 = vpop.f32.mrb[0].mxu0
  %1616 = vdwg.mxu0
  %v1618 = vsel %vm402, %v1487, 0
  %1620 = vmatprep.subr.mxu0 0.0
  %1621 = vmatpush1.xpose.msra.mxu0 %v1489
  %1622 = vmatprep.subr.mxu0 0.0
  %1623 = vmatpush1.xpose.msra.mxu0 %v1492
  %1624 = vmatprep.subr.mxu0 0.0
  %1625 = vmatpush1.xpose.msra.mxu0 %v1495
  %1626 = vmatprep.subr.mxu0 0.0
  %1627 = vmatpush1.xpose.msra.mxu0 %v1498
  %1628 = vmatprep.subr.mxu0 0.0
  %1629 = vmatpush1.xpose.msra.mxu0 %v1501
  %1630 = vmatprep.subr.mxu0 0.0
  %1631 = vmatpush1.xpose.msra.mxu0 %v1504
  %1632 = vmatprep.subr.mxu0 0.0
  %1633 = vmatpush1.xpose.msra.mxu0 %v1507
  %1634 = vmatprep.subr.mxu0 0.0
  %1635 = vmatpush1.xpose.msra.mxu0 %v1510
  %1636 = vmatprep.subr.mxu0 0.0
  %1637 = vmatpush1.xpose.msra.mxu0 0.0
  %1638 = vmatprep.subr.mxu0 0.0
  %1639 = vmatpush1.xpose.msra.mxu0 0.0
  %1640 = vmatprep.subr.mxu0 0.0
  %1641 = vmatpush1.xpose.msra.mxu0 0.0
  %1642 = vmatprep.subr.mxu0 0.0
  %1643 = vmatpush1.xpose.msra.mxu0 0.0
  %1644 = vmatprep.subr.mxu0 0.0
  %1645 = vmatpush1.xpose.msra.mxu0 0.0
  %1646 = vmatprep.subr.mxu0 0.0
  %1647 = vmatpush1.xpose.msra.mxu0 0.0
  %1648 = vmatprep.subr.mxu0 0.0
  %1649 = vmatpush1.xpose.msra.mxu0 0.0
  %1650 = vmatprep.subr.mxu0 0.0
  %1651 = vmatpush1.xpose.msra.mxu0 0.0
  %1652 = vmatprep.subr.mxu0 0.0
  %1653 = vmatpush1.xpose.msra.mxu0 0.0
  %1654 = vmatprep.subr.mxu0 0.0
  %1655 = vmatpush1.xpose.msra.mxu0 0.0
  %1656 = vmatprep.subr.mxu0 0.0
  %1657 = vmatpush1.xpose.msra.mxu0 0.0
  %1658 = vmatprep.subr.mxu0 0.0
  %1659 = vmatpush1.xpose.msra.mxu0 0.0
  %1660 = vmatprep.subr.mxu0 0.0
  %1661 = vmatpush1.xpose.msra.mxu0 0.0
  %1662 = vmatprep.subr.mxu0 0.0
  %1663 = vmatpush1.xpose.msra.mxu0 0.0
  %1664 = vmatprep.subr.mxu0 0.0
  %1665 = vmatpush1.xpose.msra.mxu0 0.0
  %1666 = vmatprep.subr.mxu0 0.0
  %1667 = vmatpush1.xpose.msra.mxu0 0.0
  %1668 = vmatprep.subr.mxu0 0.0
  %1669 = vmatpush1.xpose.msra.mxu0 0.0
  %1670 = vmatprep.subr.mxu0 0.0
  %1671 = vmatpush1.xpose.msra.mxu0 0.0
  %1672 = vmatprep.subr.mxu0 0.0
  %1673 = vmatpush1.xpose.msra.mxu0 0.0
  %1674 = vmatprep.subr.mxu0 0.0
  %1675 = vmatpush1.xpose.msra.mxu0 0.0
  %1676 = vmatprep.subr.mxu0 0.0
  %1677 = vmatpush1.xpose.msra.mxu0 0.0
  %1678 = vmatprep.subr.mxu0 0.0
  %1679 = vmatpush1.xpose.msra.mxu0 0.0
  %1680 = vmatprep.subr.mxu0 0.0
  %1681 = vmatpush1.xpose.msra.mxu0 0.0
  %1682 = vmatprep.subr.mxu0 0.0
  %1683 = vmatpush1.xpose.msra.mxu0 0.0
  %1684 = vmatprep.mubr.f32.mxu0 0.0
  %1685 = vmatmul.mubr.f32.gmra.mrb[0].mxu0 %v1618
  %v1686 = vpop.f32.mrb[0].mxu0
  %v1687 = vadd.f32 0.0, %v1686
  %v1688 = vpop.f32.mrb[0].mxu0
  %1689 = vdwg.mxu0
  %1691 = vset.pattern.permute.xlu0 32
  %1692 = vperm.xlu0 %1691, %v1579
  %v1693 = vpop.permute.xlu0 %1692
  %1696 = vset.pattern.permute.xlu0 32
  %1697 = vperm.xlu0 %1696, %v1584
  %v1698 = vpop.permute.xlu0 %1697
  %1701 = vset.pattern.permute.xlu0 32
  %1702 = vperm.xlu0 %1701, %v1589
  %v1703 = vpop.permute.xlu0 %1702
  %1706 = vset.pattern.permute.xlu0 32
  %1707 = vperm.xlu0 %1706, %v1594
  %v1708 = vpop.permute.xlu0 %1707
  %1711 = vset.pattern.permute.xlu0 32
  %1712 = vperm.xlu0 %1711, %v1599
  %v1713 = vpop.permute.xlu0 %1712
  %1716 = vset.pattern.permute.xlu0 32
  %1717 = vperm.xlu0 %1716, %v1604
  %v1718 = vpop.permute.xlu0 %1717
  %1721 = vset.pattern.permute.xlu0 32
  %1722 = vperm.xlu0 %1721, %v1609
  %v1723 = vpop.permute.xlu0 %1722
  %1726 = vset.pattern.permute.xlu0 32
  %1727 = vperm.xlu0 %1726, %v1614
  %v1728 = vpop.permute.xlu0 %1727
  %v1730 = vlaneseq
  %v1731 = vshrl.u32 %v1730, 7
  %v1732 = vsub.s32 0, %v1731
  %v1733 = vrot.slane %v1687, %v1732
  %v1734 = vadd.f32 %v1693, %v1733
  %v1735 = vadd.f32 %v1698, %v1733
  %v1736 = vadd.f32 %v1703, %v1733
  %v1737 = vadd.f32 %v1708, %v1733
  %v1738 = vadd.f32 %v1713, %v1733
  %v1739 = vadd.f32 %v1718, %v1733
  %v1740 = vadd.f32 %v1723, %v1733
  %v1741 = vadd.f32 %v1728, %v1733
  %v1742 = vmul.f32 %v1734, 0.2
  %v1743 = vmul.f32 %v1735, 0.2
  %v1744 = vmul.f32 %v1736, 0.2
  %v1745 = vmul.f32 %v1737, 0.2
  %v1746 = vmul.f32 %v1738, 0.2
  %v1747 = vmul.f32 %v1739, 0.2
  %v1748 = vmul.f32 %v1740, 0.2
  %v1749 = vmul.f32 %v1741, 0.2
  %v1750 = vmax.f32 %v1734, %v1742
  %v1751 = vmax.f32 %v1735, %v1743
  %v1752 = vmax.f32 %v1736, %v1744
  %v1753 = vmax.f32 %v1737, %v1745
  %v1754 = vmax.f32 %v1738, %v1746
  %v1755 = vmax.f32 %v1739, %v1747
  %v1756 = vmax.f32 %v1740, %v1748
  %v1757 = vmax.f32 %v1741, %v1749
  %v1758 = vadd.f32 %v1750, %v381
  %v1759 = vadd.f32 %v1751, %v382
  %v1760 = vadd.f32 %v1752, %v383
  %v1761 = vadd.f32 %v1753, %v384
  %v1762 = vadd.f32 %v1754, %v385
  %v1763 = vadd.f32 %v1755, %v386
  %v1764 = vadd.f32 %v1756, %v387
  %v1765 = vadd.f32 %v1757, %v388
  %v1766 = vsel %vm681, %v1758, -inf
  %1767 = vmax.xlane.f32.xlu0 %v1766
  %v1768 = vpop.xlane.xlu0 %1767
  %v1769 = vsel %vm681, %v1759, -inf
  %1770 = vmax.xlane.f32.xlu0 %v1769
  %v1771 = vpop.xlane.xlu0 %1770
  %v1772 = vsel %vm681, %v1760, -inf
  %1773 = vmax.xlane.f32.xlu0 %v1772
  %v1774 = vpop.xlane.xlu0 %1773
  %v1775 = vsel %vm681, %v1761, -inf
  %1776 = vmax.xlane.f32.xlu0 %v1775
  %v1777 = vpop.xlane.xlu0 %1776
  %v1778 = vsel %vm681, %v1762, -inf
  %1779 = vmax.xlane.f32.xlu0 %v1778
  %v1780 = vpop.xlane.xlu0 %1779
  %v1781 = vsel %vm681, %v1763, -inf
  %1782 = vmax.xlane.f32.xlu0 %v1781
  %v1783 = vpop.xlane.xlu0 %1782
  %v1784 = vsel %vm681, %v1764, -inf
  %1785 = vmax.xlane.f32.xlu0 %v1784
  %v1786 = vpop.xlane.xlu0 %1785
  %v1787 = vsel %vm681, %v1765, -inf
  %1788 = vmax.xlane.f32.xlu0 %v1787
  %v1789 = vpop.xlane.xlu0 %1788
  %v1790 = vsub.f32 %v1758, %v1768
  %v1791 = vsub.f32 %v1759, %v1771
  %v1792 = vsub.f32 %v1760, %v1774
  %v1793 = vsub.f32 %v1761, %v1777
  %v1794 = vsub.f32 %v1762, %v1780
  %v1795 = vsub.f32 %v1763, %v1783
  %v1796 = vsub.f32 %v1764, %v1786
  %v1797 = vsub.f32 %v1765, %v1789
  %v1798 = vmul.f32 %v1790, 1.442695
  %v1799 = vpow.pop %v1798
  %v1800 = vmul.f32 %v1791, 1.442695
  %v1801 = vpow.pop %v1800
  %v1802 = vmul.f32 %v1792, 1.442695
  %v1803 = vpow.pop %v1802
  %v1804 = vmul.f32 %v1793, 1.442695
  %v1805 = vpow.pop %v1804
  %v1806 = vmul.f32 %v1794, 1.442695
  %v1807 = vpow.pop %v1806
  %v1808 = vmul.f32 %v1795, 1.442695
  %v1809 = vpow.pop %v1808
  %v1810 = vmul.f32 %v1796, 1.442695
  %v1811 = vpow.pop %v1810
  %v1812 = vmul.f32 %v1797, 1.442695
  %v1813 = vpow.pop %v1812
  %v1814 = vmul.f32 %v1799, %v365
  %v1815 = vmul.f32 %v1801, %v366
  %v1816 = vmul.f32 %v1803, %v367
  %v1817 = vmul.f32 %v1805, %v368
  %v1818 = vmul.f32 %v1807, %v369
  %v1819 = vmul.f32 %v1809, %v370
  %v1820 = vmul.f32 %v1811, %v371
  %v1821 = vmul.f32 %v1813, %v372
  %v1822 = vsel %vm681, %v1814, 0.0
  %1823 = vadd.xlane.f32.xlu0 %v1822
  %v1824 = vpop.xlane.xlu0 %1823
  %v1825 = vsel %vm681, %v1815, 0.0
  %1826 = vadd.xlane.f32.xlu0 %v1825
  %v1827 = vpop.xlane.xlu0 %1826
  %v1828 = vsel %vm681, %v1816, 0.0
  %1829 = vadd.xlane.f32.xlu0 %v1828
  %v1830 = vpop.xlane.xlu0 %1829
  %v1831 = vsel %vm681, %v1817, 0.0
  %1832 = vadd.xlane.f32.xlu0 %v1831
  %v1833 = vpop.xlane.xlu0 %1832
  %v1834 = vsel %vm681, %v1818, 0.0
  %1835 = vadd.xlane.f32.xlu0 %v1834
  %v1836 = vpop.xlane.xlu0 %1835
  %v1837 = vsel %vm681, %v1819, 0.0
  %1838 = vadd.xlane.f32.xlu0 %v1837
  %v1839 = vpop.xlane.xlu0 %1838
  %v1840 = vsel %vm681, %v1820, 0.0
  %1841 = vadd.xlane.f32.xlu0 %v1840
  %v1842 = vpop.xlane.xlu0 %1841
  %v1843 = vsel %vm681, %v1821, 0.0
  %1844 = vadd.xlane.f32.xlu0 %v1843
  %v1845 = vpop.xlane.xlu0 %1844
  %v1846 = vrcp.pop %v1824
  %v1847 = vrcp.pop %v1827
  %v1848 = vrcp.pop %v1830
  %v1849 = vrcp.pop %v1833
  %v1850 = vrcp.pop %v1836
  %v1851 = vrcp.pop %v1839
  %v1852 = vrcp.pop %v1842
  %v1853 = vrcp.pop %v1845
  %v1854 = vmul.f32 %v1814, %v1846
  %v1855 = vmul.f32 %v1815, %v1847
  %v1856 = vmul.f32 %v1816, %v1848
  %v1857 = vmul.f32 %v1817, %v1849
  %v1858 = vmul.f32 %v1818, %v1850
  %v1859 = vmul.f32 %v1819, %v1851
  %v1860 = vmul.f32 %v1820, %v1852
  %v1861 = vmul.f32 %v1821, %v1853
  %v1862 = vlaneseq
  %v1863 = vshrl.u32 %v1862, 7
  %v1864 = vsub.s32 1, %v1863
  %v1865 = vrot.slane %v1487, %v1864
  %v1867 = vsel %vm681, %v1854, 0
  %v1870 = vsel %vm681, %v1855, 0
  %v1873 = vsel %vm681, %v1856, 0
  %v1876 = vsel %vm681, %v1857, 0
  %v1879 = vsel %vm681, %v1858, 0
  %v1882 = vsel %vm681, %v1859, 0
  %v1885 = vsel %vm681, %v1860, 0
  %v1888 = vsel %vm681, %v1861, 0
  %1890 = vmatprep.subr.mxu0 0.0
  %1891 = vmatpush1.msra.mxu0 %v1579
  %1892 = vmatprep.subr.mxu0 0.0
  %1893 = vmatpush1.msra.mxu0 %v1584
  %1894 = vmatprep.subr.mxu0 0.0
  %1895 = vmatpush1.msra.mxu0 %v1589
  %1896 = vmatprep.subr.mxu0 0.0
  %1897 = vmatpush1.msra.mxu0 %v1594
  %1898 = vmatprep.subr.mxu0 0.0
  %1899 = vmatpush1.msra.mxu0 %v1599
  %1900 = vmatprep.subr.mxu0 0.0
  %1901 = vmatpush1.msra.mxu0 %v1604
  %1902 = vmatprep.subr.mxu0 0.0
  %1903 = vmatpush1.msra.mxu0 %v1609
  %1904 = vmatprep.subr.mxu0 0.0
  %1905 = vmatpush1.msra.mxu0 %v1614
  %1906 = vmatprep.subr.mxu0 0.0
  %1907 = vmatpush1.msra.mxu0 0.0
  %1908 = vmatprep.subr.mxu0 0.0
  %1909 = vmatpush1.msra.mxu0 0.0
  %1910 = vmatprep.subr.mxu0 0.0
  %1911 = vmatpush1.msra.mxu0 0.0
  %1912 = vmatprep.subr.mxu0 0.0
  %1913 = vmatpush1.msra.mxu0 0.0
  %1914 = vmatprep.subr.mxu0 0.0
  %1915 = vmatpush1.msra.mxu0 0.0
  %1916 = vmatprep.subr.mxu0 0.0
  %1917 = vmatpush1.msra.mxu0 0.0
  %1918 = vmatprep.subr.mxu0 0.0
  %1919 = vmatpush1.msra.mxu0 0.0
  %1920 = vmatprep.subr.mxu0 0.0
  %1921 = vmatpush1.msra.mxu0 0.0
  %1922 = vmatprep.subr.mxu0 0.0
  %1923 = vmatpush1.msra.mxu0 0.0
  %1924 = vmatprep.subr.mxu0 0.0
  %1925 = vmatpush1.msra.mxu0 0.0
  %1926 = vmatprep.subr.mxu0 0.0
  %1927 = vmatpush1.msra.mxu0 0.0
  %1928 = vmatprep.subr.mxu0 0.0
  %1929 = vmatpush1.msra.mxu0 0.0
  %1930 = vmatprep.subr.mxu0 0.0
  %1931 = vmatpush1.msra.mxu0 0.0
  %1932 = vmatprep.subr.mxu0 0.0
  %1933 = vmatpush1.msra.mxu0 0.0
  %1934 = vmatprep.subr.mxu0 0.0
  %1935 = vmatpush1.msra.mxu0 0.0
  %1936 = vmatprep.subr.mxu0 0.0
  %1937 = vmatpush1.msra.mxu0 0.0
  %1938 = vmatprep.subr.mxu0 0.0
  %1939 = vmatpush1.msra.mxu0 0.0
  %1940 = vmatprep.subr.mxu0 0.0
  %1941 = vmatpush1.msra.mxu0 0.0
  %1942 = vmatprep.subr.mxu0 0.0
  %1943 = vmatpush1.msra.mxu0 0.0
  %1944 = vmatprep.subr.mxu0 0.0
  %1945 = vmatpush1.msra.mxu0 0.0
  %1946 = vmatprep.subr.mxu0 0.0
  %1947 = vmatpush1.msra.mxu0 0.0
  %1948 = vmatprep.subr.mxu0 0.0
  %1949 = vmatpush1.msra.mxu0 0.0
  %1950 = vmatprep.subr.mxu0 0.0
  %1951 = vmatpush1.msra.mxu0 0.0
  %1952 = vmatprep.subr.mxu0 0.0
  %1953 = vmatpush1.msra.mxu0 0.0
  %1954 = vmatprep.mubr.f32.mxu0 0.0
  %1955 = vmatmul.mubr.f32.gmra.mrb[0].mxu0 %v1867
  %v1956 = vpop.f32.mrb[0].mxu0
  %v1957 = vadd.f32 %v1865, %v1956
  %v1958 = vpop.f32.mrb[0].mxu0
  %1959 = vmatprep.mubr.f32.mxu0 0.0
  %1960 = vmatmul.mubr.f32.gmra.mrb[0].mxu0 %v1870
  %v1961 = vpop.f32.mrb[0].mxu0
  %v1962 = vadd.f32 %v1865, %v1961
  %v1963 = vpop.f32.mrb[0].mxu0
  %1964 = vmatprep.mubr.f32.mxu0 0.0
  %1965 = vmatmul.mubr.f32.gmra.mrb[0].mxu0 %v1873
  %v1966 = vpop.f32.mrb[0].mxu0
  %v1967 = vadd.f32 %v1865, %v1966
  %v1968 = vpop.f32.mrb[0].mxu0
  %1969 = vmatprep.mubr.f32.mxu0 0.0
  %1970 = vmatmul.mubr.f32.gmra.mrb[0].mxu0 %v1876
  %v1971 = vpop.f32.mrb[0].mxu0
  %v1972 = vadd.f32 %v1865, %v1971
  %v1973 = vpop.f32.mrb[0].mxu0
  %1974 = vmatprep.mubr.f32.mxu0 0.0
  %1975 = vmatmul.mubr.f32.gmra.mrb[0].mxu0 %v1879
  %v1976 = vpop.f32.mrb[0].mxu0
  %v1977 = vadd.f32 %v1865, %v1976
  %v1978 = vpop.f32.mrb[0].mxu0
  %1979 = vmatprep.mubr.f32.mxu0 0.0
  %1980 = vmatmul.mubr.f32.gmra.mrb[0].mxu0 %v1882
  %v1981 = vpop.f32.mrb[0].mxu0
  %v1982 = vadd.f32 %v1865, %v1981
  %v1983 = vpop.f32.mrb[0].mxu0
  %1984 = vmatprep.mubr.f32.mxu0 0.0
  %1985 = vmatmul.mubr.f32.gmra.mrb[0].mxu0 %v1885
  %v1986 = vpop.f32.mrb[0].mxu0
  %v1987 = vadd.f32 %v1865, %v1986
  %v1988 = vpop.f32.mrb[0].mxu0
  %1989 = vmatprep.mubr.f32.mxu0 0.0
  %1990 = vmatmul.mubr.f32.gmra.mrb[0].mxu0 %v1888
  %v1991 = vpop.f32.mrb[0].mxu0
  %v1992 = vadd.f32 %v1865, %v1991
  %v1993 = vpop.f32.mrb[0].mxu0
  %1994 = vdwg.mxu0
  %vm1995 = vcmp.gt.f32.partialorder %v1957, 0.0
  %vm1996 = vcmp.gt.f32.partialorder %v1962, 0.0
  %vm1997 = vcmp.gt.f32.partialorder %v1967, 0.0
  %vm1998 = vcmp.gt.f32.partialorder %v1972, 0.0
  %vm1999 = vcmp.gt.f32.partialorder %v1977, 0.0
  %vm2000 = vcmp.gt.f32.partialorder %v1982, 0.0
  %vm2001 = vcmp.gt.f32.partialorder %v1987, 0.0
  %vm2002 = vcmp.gt.f32.partialorder %v1992, 0.0
  %v2003 = vlaneseq
  %v2004 = vshrl.u32 %v2003, 7
  %v2005 = vsub.s32 2, %v2004
  %v2006 = vrot.slane %v1487, %v2005
  %v2007 = vmul.f32 %v2006, %v1957
  %v2008 = vmul.f32 %v2006, %v1962
  %v2009 = vmul.f32 %v2006, %v1967
  %v2010 = vmul.f32 %v2006, %v1972
  %v2011 = vmul.f32 %v2006, %v1977
  %v2012 = vmul.f32 %v2006, %v1982
  %v2013 = vmul.f32 %v2006, %v1987
  %v2014 = vmul.f32 %v2006, %v1992
  %v2015 = vsel %vm1995, %v1957, %v2007
  %v2016 = vsel %vm1996, %v1962, %v2008
  %v2017 = vsel %vm1997, %v1967, %v2009
  %v2018 = vsel %vm1998, %v1972, %v2010
  %v2019 = vsel %vm1999, %v1977, %v2011
  %v2020 = vsel %vm2000, %v1982, %v2012
  %v2021 = vsel %vm2001, %v1987, %v2013
  %v2022 = vsel %vm2002, %v1992, %v2014
  %v2023 = vld [vmem:[%s5] sm:$0xff]
  %v2024 = vld [vmem:[%s5 + $0x8] sm:$0xff]
  %v2025 = vld [vmem:[%s5 + $0x10] sm:$0xff]
  %v2026 = vld [vmem:[%s5 + $0x18] sm:$0xff]
  %v2027 = vld [vmem:[%s5 + $0x20] sm:$0x1]
  %v2028 = vlaneseq
  %v2029 = vshrl.u32 %v2028, 7
  %v2030 = vsub.s32 0, %v2029
  %v2031 = vrot.slane %v2027, %v2030
  %v2033 = vsel %vm402, %v2015, 0
  %v2036 = vsel %vm402, %v2016, 0
  %v2039 = vsel %vm402, %v2017, 0
  %v2042 = vsel %vm402, %v2018, 0
  %v2045 = vsel %vm402, %v2019, 0
  %v2048 = vsel %vm402, %v2020, 0
  %v2051 = vsel %vm402, %v2021, 0
  %v2054 = vsel %vm402, %v2022, 0
  %2056 = vmatprep.subr.mxu0 0.0
  %2057 = vmatpush1.msra.mxu0 %v2023
  %2058 = vmatprep.subr.mxu0 0.0
  %2059 = vmatpush1.msra.mxu0 %v2024
  %2060 = vmatprep.subr.mxu0 0.0
  %2061 = vmatpush1.msra.mxu0 %v2025
  %2062 = vmatprep.subr.mxu0 0.0
  %2063 = vmatpush1.msra.mxu0 %v2026
  %2064 = vmatprep.subr.mxu0 0.0
  %2065 = vmatpush1.msra.mxu0 0.0
  %2066 = vmatprep.subr.mxu0 0.0
  %2067 = vmatpush1.msra.mxu0 0.0
  %2068 = vmatprep.subr.mxu0 0.0
  %2069 = vmatpush1.msra.mxu0 0.0
  %2070 = vmatprep.subr.mxu0 0.0
  %2071 = vmatpush1.msra.mxu0 0.0
  %2072 = vmatprep.subr.mxu0 0.0
  %2073 = vmatpush1.msra.mxu0 0.0
  %2074 = vmatprep.subr.mxu0 0.0
  %2075 = vmatpush1.msra.mxu0 0.0
  %2076 = vmatprep.subr.mxu0 0.0
  %2077 = vmatpush1.msra.mxu0 0.0
  %2078 = vmatprep.subr.mxu0 0.0
  %2079 = vmatpush1.msra.mxu0 0.0
  %2080 = vmatprep.subr.mxu0 0.0
  %2081 = vmatpush1.msra.mxu0 0.0
  %2082 = vmatprep.subr.mxu0 0.0
  %2083 = vmatpush1.msra.mxu0 0.0
  %2084 = vmatprep.subr.mxu0 0.0
  %2085 = vmatpush1.msra.mxu0 0.0
  %2086 = vmatprep.subr.mxu0 0.0
  %2087 = vmatpush1.msra.mxu0 0.0
  %2088 = vmatprep.subr.mxu0 0.0
  %2089 = vmatpush1.msra.mxu0 0.0
  %2090 = vmatprep.subr.mxu0 0.0
  %2091 = vmatpush1.msra.mxu0 0.0
  %2092 = vmatprep.subr.mxu0 0.0
  %2093 = vmatpush1.msra.mxu0 0.0
  %2094 = vmatprep.subr.mxu0 0.0
  %2095 = vmatpush1.msra.mxu0 0.0
  %2096 = vmatprep.subr.mxu0 0.0
  %2097 = vmatpush1.msra.mxu0 0.0
  %2098 = vmatprep.subr.mxu0 0.0
  %2099 = vmatpush1.msra.mxu0 0.0
  %2100 = vmatprep.subr.mxu0 0.0
  %2101 = vmatpush1.msra.mxu0 0.0
  %2102 = vmatprep.subr.mxu0 0.0
  %2103 = vmatpush1.msra.mxu0 0.0
  %2104 = vmatprep.subr.mxu0 0.0
  %2105 = vmatpush1.msra.mxu0 0.0
  %2106 = vmatprep.subr.mxu0 0.0
  %2107 = vmatpush1.msra.mxu0 0.0
  %2108 = vmatprep.subr.mxu0 0.0
  %2109 = vmatpush1.msra.mxu0 0.0
  %2110 = vmatprep.subr.mxu0 0.0
  %2111 = vmatpush1.msra.mxu0 0.0
  %2112 = vmatprep.subr.mxu0 0.0
  %2113 = vmatpush1.msra.mxu0 0.0
  %2114 = vmatprep.subr.mxu0 0.0
  %2115 = vmatpush1.msra.mxu0 0.0
  %2116 = vmatprep.subr.mxu0 0.0
  %2117 = vmatpush1.msra.mxu0 0.0
  %2118 = vmatprep.subr.mxu0 0.0
  %2119 = vmatpush1.msra.mxu0 0.0
  %2120 = vmatprep.mubr.f32.mxu0 0.0
  %2121 = vmatmul.mubr.f32.gmra.mrb[0].mxu0 %v2033
  %v2122 = vpop.f32.mrb[0].mxu0
  %v2123 = vadd.f32 %v2031, %v2122
  %v2124 = vpop.f32.mrb[0].mxu0
  %2125 = vmatprep.mubr.f32.mxu0 0.0
  %2126 = vmatmul.mubr.f32.gmra.mrb[0].mxu0 %v2036
  %v2127 = vpop.f32.mrb[0].mxu0
  %v2128 = vadd.f32 %v2031, %v2127
  %v2129 = vpop.f32.mrb[0].mxu0
  %2130 = vmatprep.mubr.f32.mxu0 0.0
  %2131 = vmatmul.mubr.f32.gmra.mrb[0].mxu0 %v2039
  %v2132 = vpop.f32.mrb[0].mxu0
  %v2133 = vadd.f32 %v2031, %v2132
  %v2134 = vpop.f32.mrb[0].mxu0
  %2135 = vmatprep.mubr.f32.mxu0 0.0
  %2136 = vmatmul.mubr.f32.gmra.mrb[0].mxu0 %v2042
  %v2137 = vpop.f32.mrb[0].mxu0
  %v2138 = vadd.f32 %v2031, %v2137
  %v2139 = vpop.f32.mrb[0].mxu0
  %2140 = vmatprep.mubr.f32.mxu0 0.0
  %2141 = vmatmul.mubr.f32.gmra.mrb[0].mxu0 %v2045
  %v2142 = vpop.f32.mrb[0].mxu0
  %v2143 = vadd.f32 %v2031, %v2142
  %v2144 = vpop.f32.mrb[0].mxu0
  %2145 = vmatprep.mubr.f32.mxu0 0.0
  %2146 = vmatmul.mubr.f32.gmra.mrb[0].mxu0 %v2048
  %v2147 = vpop.f32.mrb[0].mxu0
  %v2148 = vadd.f32 %v2031, %v2147
  %v2149 = vpop.f32.mrb[0].mxu0
  %2150 = vmatprep.mubr.f32.mxu0 0.0
  %2151 = vmatmul.mubr.f32.gmra.mrb[0].mxu0 %v2051
  %v2152 = vpop.f32.mrb[0].mxu0
  %v2153 = vadd.f32 %v2031, %v2152
  %v2154 = vpop.f32.mrb[0].mxu0
  %2155 = vmatprep.mubr.f32.mxu0 0.0
  %2156 = vmatmul.mubr.f32.gmra.mrb[0].mxu0 %v2054
  %v2157 = vpop.f32.mrb[0].mxu0
  %v2158 = vadd.f32 %v2031, %v2157
  %v2159 = vpop.f32.mrb[0].mxu0
  %2160 = vdwg.mxu0
  %2161 = vst.msk [vmem:[%s6] sm:$0xff] %vm402, %v2123
  %2162 = vst.msk [vmem:[%s6 + $0x8] sm:$0xff] %vm402, %v2128
  %2163 = vst.msk [vmem:[%s6 + $0x10] sm:$0xff] %vm402, %v2133
  %2164 = vst.msk [vmem:[%s6 + $0x18] sm:$0xff] %vm402, %v2138
  %2165 = vst.msk [vmem:[%s6 + $0x20] sm:$0xff] %vm402, %v2143
  %2166 = vst.msk [vmem:[%s6 + $0x28] sm:$0xff] %vm402, %v2148
  %2167 = vst.msk [vmem:[%s6 + $0x30] sm:$0xff] %vm402, %v2153
  %2168 = vst.msk [vmem:[%s6 + $0x38] sm:$0xff] %vm402, %v2158
  // Predicated region
  $region26: #{tpu_custom_call.1} parent=0 // pred_check
    _
  $region27: #{tpu_custom_call.1} parent=0 // pred_check_branch
    %2170 = sbr.rel (0) target = $region29
  $region28: #{tpu_custom_call.1} parent=0 // pred_region
    _
  $region29: #{tpu_custom_call.1} parent=0 // pred_fallthru
    _
  // Predicated region
  $region30: #{tpu_custom_call.1} parent=0 // pred_check
    _
  $region31: #{tpu_custom_call.1} parent=0 // pred_check_branch
    %2172 = sbr.rel (0) target = $region33
  $region32: #{tpu_custom_call.1} parent=0 // pred_region
    _
  $region33: #{tpu_custom_call.1} parent=0 // pred_fallthru
    _

</llo_original>
